<compile_context>
chip_gen: v5e
topology: v5e:2x2
jax: 0.10.0
libtpu: 0.0.40
codegen_flags: <defaults>
</compile_context>

<pallas_src>
import functools

import numpy as np
import jax
import jax.numpy as jnp
from jax.experimental import pallas as pl
from jax.experimental.pallas import tpu as pltpu

LANE = 128


def _round_up(x, m):
    return ((x + m - 1) // m) * m


def adafs_soft_kernel(field_ref, mask_ref,
                      cw1_ref, cb1_ref, cw2_ref, cb2_ref, cw3_ref, cb3_ref,
                      mw1_ref, mb1_ref, mw2_ref, mb2_ref,
                      out_ref, *, mxu_dtype):
    x = field_ref[...].astype(jnp.float32)                       # (TB, D) elementwise in f32

    def mm(a, w_ref):
        # MXU matmul: (optionally) bf16 operands, f32 accumulation.
        return jnp.dot(a.astype(mxu_dtype), w_ref[...],
                       preferred_element_type=jnp.float32)

    # ---- controller MLP: 3x (Linear + ReLU), dropout = identity, then softmax(dim=1)
    h = jnp.maximum(mm(x, cw1_ref) + cb1_ref[...], 0.0)
    h = jnp.maximum(mm(h, cw2_ref) + cb2_ref[...], 0.0)
    logits = jnp.maximum(mm(h, cw3_ref) + cb3_ref[...], 0.0)     # (TB, num_fields)

    m = jnp.max(logits, axis=1, keepdims=True)
    e = jnp.exp(logits - m)
    inv = pl.reciprocal(jnp.sum(e, axis=1, keepdims=True), approx=True)  # EUP
    w = e * inv                                                  # (TB, num_fields)

    # ---- per-field (segment-wise) scaling via 0/1 membership matmul:
    #      scale[b, j] = w[b, field_index_of_column_j]
    scale = jnp.dot(w.astype(mxu_dtype), mask_ref[...],
                    preferred_element_type=jnp.float32)          # (TB, D)
    x1 = x * scale

    # ---- main MLP: 2x (Linear + ReLU); hidden/output dims are zero-padded to 128 lanes.
    g = jnp.maximum(mm(x1, mw1_ref) + mb1_ref[...], 0.0)
    res = jnp.maximum(mm(g, mw2_ref) + mb2_ref[...], 0.0)        # (TB, OUT_P)

    out_ref[...] = res.astype(out_ref.dtype)


def adafs_soft_forward(field, mask, params, *, out_dim=5, tb=512,
                       mxu_dtype=jnp.bfloat16):
    B, D = field.shape
    nf = mask.shape[0]

    # ---- pad main-MLP hidden/output dims to lane-dense multiples of 128 (zero columns
    #      are inert: bias=0 -> relu(0)=0 -> zero rows of mw2 contribute nothing).
    hid = params["mw1"].shape[1]
    hid_p = _round_up(max(hid, LANE), LANE)
    out_p = _round_up(max(out_dim, LANE), LANE)

    mw1 = jnp.zeros((D, hid_p), jnp.float32).at[:, :hid].set(params["mw1"])
    mb1 = jnp.zeros((1, hid_p), jnp.float32).at[:, :hid].set(params["mb1"])
    mw2 = jnp.zeros((hid_p, out_p), jnp.float32).at[:hid, :out_dim].set(params["mw2"])
    mb2 = jnp.zeros((1, out_p), jnp.float32).at[:, :out_dim].set(params["mb2"])

    # ---- batch tiling (TB multiple of 8; pad batch up to a multiple of TB).
    tb = min(tb, _round_up(B, 8))
    tb = _round_up(tb, 8)
    Bp = _round_up(B, tb)
    if Bp != B:
        field = jnp.pad(field, ((0, Bp - B), (0, 0)))
    n_steps = Bp // tb

    wt = lambda a: a.astype(mxu_dtype)
    inputs = (field,
              wt(mask),
              wt(params["cw1"]), params["cb1"],
              wt(params["cw2"]), params["cb2"],
              wt(params["cw3"]), params["cb3"],
              wt(mw1), mb1, wt(mw2), mb2)

    # Field / output stream per batch tile; everything else VMEM-resident (constant block).
    def resident(a):
        nd = a.ndim
        return pl.BlockSpec(a.shape, lambda i, _n=nd: (0,) * _n)

    in_specs = ([pl.BlockSpec((tb, D), lambda i: (i, 0))] +
                [resident(a) for a in inputs[1:]])
    out_spec = pl.BlockSpec((tb, out_p), lambda i: (i, 0))

    flops = 2 * Bp * (D * params["cw1"].shape[1]
                      + params["cw1"].shape[1] * params["cw2"].shape[1]
                      + params["cw2"].shape[1] * nf
                      + nf * D
                      + D * hid_p
                      + hid_p * out_p)
    bytes_accessed = (field.size * field.dtype.itemsize
                      + sum(int(np.prod(a.shape)) * a.dtype.itemsize for a in inputs[1:])
                      + Bp * out_p * 4)
    cost = pl.CostEstimate(flops=int(flops),
                           transcendentals=int(Bp * (nf + 1)),
                           bytes_accessed=int(bytes_accessed))

    kernel = functools.partial(adafs_soft_kernel, mxu_dtype=mxu_dtype)

    out_padded = pl.pallas_call(
        kernel,
        out_shape=jax.ShapeDtypeStruct((Bp, out_p), jnp.float32),
        grid_spec=pltpu.PrefetchScalarGridSpec(
            num_scalar_prefetch=0,
            grid=(n_steps,),
            in_specs=in_specs,
            out_specs=out_spec,
        ),
        compiler_params=pltpu.CompilerParams(
            dimension_semantics=("parallel",),
            vmem_limit_bytes=32 * 1024 * 1024,
        ),
        cost_estimate=cost,
    )(*inputs)

    return out_padded[:B, :out_dim]


def _xavier_normal(key, fan_in, fan_out):
    std = float(np.sqrt(2.0 / (fan_in + fan_out)))
    return std * jax.random.normal(key, (fan_in, fan_out), dtype=jnp.float32)


def make_params(key, embed_dim, num_fields):
    """Parameter init matching the module's shapes; weights stored (in_dim, out_dim)."""
    ks = jax.random.split(key, 5)
    hid = embed_dim // 2
    return {
        # controller_mlp: embed_dim -> 64 -> 32 -> num_fields (xavier normal, zero bias)
        "cw1": _xavier_normal(ks[0], embed_dim, 64),
        "cb1": jnp.zeros((1, 64), jnp.float32),
        "cw2": _xavier_normal(ks[1], 64, 32),
        "cb2": jnp.zeros((1, 32), jnp.float32),
        "cw3": _xavier_normal(ks[2], 32, num_fields),
        "cb3": jnp.zeros((1, num_fields), jnp.float32),
        # main MLP: embed_dim -> embed_dim//2 -> 5
        "mw1": _xavier_normal(ks[3], embed_dim, hid),
        "mb1": jnp.zeros((1, hid), jnp.float32),
        "mw2": _xavier_normal(ks[4], hid, 5),
        "mb2": jnp.zeros((1, 5), jnp.float32),
    }


def make_field_mask(inputs_dim, embed_dim):
    """(num_fields, embed_dim) 0/1 membership matrix built from cumsum offsets."""
    dims = list(inputs_dim.values())
    offsets = [0] + np.cumsum(dims).tolist()
    mask = np.zeros((len(dims), embed_dim), dtype=np.float32)
    for i in range(len(offsets) - 1):
        mask[i, offsets[i]:offsets[i + 1]] = 1.0
    return jnp.asarray(mask)


def reference_forward(field, mask, p):
    """Pure-JAX reference (mirrors the PyTorch forward, eval-mode dropout)."""
    x = field.astype(jnp.float32)
    h = jax.nn.relu(x @ p["cw1"] + p["cb1"])
    h = jax.nn.relu(h @ p["cw2"] + p["cb2"])
    logits = jax.nn.relu(h @ p["cw3"] + p["cb3"])
    w = jax.nn.softmax(logits, axis=1)
    x1 = x * (w @ mask)
    g = jax.nn.relu(x1 @ p["mw1"] + p["mb1"])
    return jax.nn.relu(g @ p["mw2"] + p["mb2"])


if __name__ == "__main__":
    # 4 fields of dim 8 -> embed_dim 32; batch chosen non-multiple of the tile to
    # exercise batch padding and a multi-step (pipelined) grid.
    inputs_dim = {"f0": 8, "f1": 8, "f2": 8, "f3": 8}
    num_fields = len(inputs_dim)
    embed_dim = sum(inputs_dim.values())            # 32
    B = 300
    TB = 128

    key = jax.random.PRNGKey(0)
    k_field, k_params = jax.random.split(key)

    field = jax.random.normal(k_field, (B, embed_dim), dtype=jnp.float32)
    params = make_params(k_params, embed_dim, num_fields)
    mask = make_field_mask(inputs_dim, embed_dim)

    ref = jax.block_until_ready(reference_forward(field, mask, params))

    # f32 MXU path (tight tolerance; approx reciprocal only).
    out_f32 = jax.block_until_ready(
        adafs_soft_forward(field, mask, params, tb=TB, mxu_dtype=jnp.float32))
    np.testing.assert_allclose(np.asarray(out_f32), np.asarray(ref),
                               rtol=5e-3, atol=5e-3)

    # bf16 MXU path (f32 accumulation; looser tolerance).
    out_bf16 = jax.block_until_ready(
        adafs_soft_forward(field, mask, params, tb=TB, mxu_dtype=jnp.bfloat16))
    np.testing.assert_allclose(np.asarray(out_bf16), np.asarray(ref),
                               rtol=5e-2, atol=5e-2)

    print("KERNEL_OK")
</pallas_src>

<mosaic_0001>
module attributes {stable_mosaic.version = 11 : i64} {
  func.func @adafs_soft_kernel(%arg0: i32, %arg1: memref<128x32xf32, #tpu.memory_space<vmem>>, %arg2: memref<4x32xf32, #tpu.memory_space<vmem>>, %arg3: memref<32x64xf32, #tpu.memory_space<vmem>>, %arg4: memref<1x64xf32, #tpu.memory_space<vmem>>, %arg5: memref<64x32xf32, #tpu.memory_space<vmem>>, %arg6: memref<1x32xf32, #tpu.memory_space<vmem>>, %arg7: memref<32x4xf32, #tpu.memory_space<vmem>>, %arg8: memref<1x4xf32, #tpu.memory_space<vmem>>, %arg9: memref<32x128xf32, #tpu.memory_space<vmem>>, %arg10: memref<1x128xf32, #tpu.memory_space<vmem>>, %arg11: memref<128x128xf32, #tpu.memory_space<vmem>>, %arg12: memref<1x128xf32, #tpu.memory_space<vmem>>, %arg13: memref<128x128xf32, #tpu.memory_space<vmem>>) attributes {dimension_semantics = [#tpu.dimension_semantics<parallel>], iteration_bounds = array<i64: 3>, scalar_prefetch = 0 : i64, scratch_operands = 0 : i64, tpu.core_type = #tpu.core_type<tc>, window_params = [{transform_indices = @transform_0, window_bounds = array<i64: 128, 32>}, {pipeline_mode = #tpu.pipeline_mode<synchronous>, transform_indices = @transform_1, window_bounds = array<i64: 4, 32>}, {pipeline_mode = #tpu.pipeline_mode<synchronous>, transform_indices = @transform_2, window_bounds = array<i64: 32, 64>}, {pipeline_mode = #tpu.pipeline_mode<synchronous>, transform_indices = @transform_3, window_bounds = array<i64: 1, 64>}, {pipeline_mode = #tpu.pipeline_mode<synchronous>, transform_indices = @transform_4, window_bounds = array<i64: 64, 32>}, {pipeline_mode = #tpu.pipeline_mode<synchronous>, transform_indices = @transform_5, window_bounds = array<i64: 1, 32>}, {pipeline_mode = #tpu.pipeline_mode<synchronous>, transform_indices = @transform_6, window_bounds = array<i64: 32, 4>}, {pipeline_mode = #tpu.pipeline_mode<synchronous>, transform_indices = @transform_7, window_bounds = array<i64: 1, 4>}, {pipeline_mode = #tpu.pipeline_mode<synchronous>, transform_indices = @transform_8, window_bounds = array<i64: 32, 128>}, {pipeline_mode = #tpu.pipeline_mode<synchronous>, transform_indices = @transform_9, window_bounds = array<i64: 1, 128>}, {pipeline_mode = #tpu.pipeline_mode<synchronous>, transform_indices = @transform_10, window_bounds = array<i64: 128, 128>}, {pipeline_mode = #tpu.pipeline_mode<synchronous>, transform_indices = @transform_11, window_bounds = array<i64: 1, 128>}, {transform_indices = @transform_12, window_bounds = array<i64: 128, 128>}]} {
    %c0 = arith.constant 0 : index
    %c0_0 = arith.constant 0 : index
    %0 = vector.load %arg1[%c0, %c0_0] : memref<128x32xf32, #tpu.memory_space<vmem>>, vector<128x32xf32>
    %c0_1 = arith.constant 0 : index
    %c0_2 = arith.constant 0 : index
    %1 = vector.load %arg3[%c0_1, %c0_2] : memref<32x64xf32, #tpu.memory_space<vmem>>, vector<32x64xf32>
    %cst = arith.constant dense<0.000000e+00> : vector<128x64xf32>
    %2 = tpu.matmul %0, %1, %cst {dimension_numbers = #tpu.dot_dimension_numbers<[1], [0], [0], [1], [0, 0, 1, 1], [], []>} : vector<128x32xf32>, vector<32x64xf32>, vector<128x64xf32> -> vector<128x64xf32>
    %c0_3 = arith.constant 0 : index
    %c0_4 = arith.constant 0 : index
    %3 = vector.load %arg4[%c0_3, %c0_4] : memref<1x64xf32, #tpu.memory_space<vmem>>, vector<1x64xf32>
    %4 = vector.broadcast %3 : vector<1x64xf32> to vector<128x64xf32>
    %5 = arith.addf %2, %4 : vector<128x64xf32>
    %cst_5 = arith.constant 0.000000e+00 : f32
    %6 = vector.broadcast %cst_5 : f32 to vector<128x64xf32>
    %7 = arith.maximumf %5, %6 : vector<128x64xf32>
    %c0_6 = arith.constant 0 : index
    %c0_7 = arith.constant 0 : index
    %8 = vector.load %arg5[%c0_6, %c0_7] : memref<64x32xf32, #tpu.memory_space<vmem>>, vector<64x32xf32>
    %cst_8 = arith.constant dense<0.000000e+00> : vector<128x32xf32>
    %9 = tpu.matmul %7, %8, %cst_8 {dimension_numbers = #tpu.dot_dimension_numbers<[1], [0], [0], [1], [0, 0, 1, 1], [], []>} : vector<128x64xf32>, vector<64x32xf32>, vector<128x32xf32> -> vector<128x32xf32>
    %c0_9 = arith.constant 0 : index
    %c0_10 = arith.constant 0 : index
    %10 = vector.load %arg6[%c0_9, %c0_10] : memref<1x32xf32, #tpu.memory_space<vmem>>, vector<1x32xf32>
    %11 = vector.broadcast %10 : vector<1x32xf32> to vector<128x32xf32>
    %12 = arith.addf %9, %11 : vector<128x32xf32>
    %cst_11 = arith.constant 0.000000e+00 : f32
    %13 = vector.broadcast %cst_11 : f32 to vector<128x32xf32>
    %14 = arith.maximumf %12, %13 : vector<128x32xf32>
    %c0_12 = arith.constant 0 : index
    %c0_13 = arith.constant 0 : index
    %15 = vector.load %arg7[%c0_12, %c0_13] : memref<32x4xf32, #tpu.memory_space<vmem>>, vector<32x4xf32>
    %cst_14 = arith.constant dense<0.000000e+00> : vector<128x4xf32>
    %16 = tpu.matmul %14, %15, %cst_14 {dimension_numbers = #tpu.dot_dimension_numbers<[1], [0], [0], [1], [0, 0, 1, 1], [], []>} : vector<128x32xf32>, vector<32x4xf32>, vector<128x4xf32> -> vector<128x4xf32>
    %c0_15 = arith.constant 0 : index
    %c0_16 = arith.constant 0 : index
    %17 = vector.load %arg8[%c0_15, %c0_16] : memref<1x4xf32, #tpu.memory_space<vmem>>, vector<1x4xf32>
    %18 = vector.broadcast %17 : vector<1x4xf32> to vector<128x4xf32>
    %19 = arith.addf %16, %18 : vector<128x4xf32>
    %cst_17 = arith.constant 0.000000e+00 : f32
    %20 = vector.broadcast %cst_17 : f32 to vector<128x4xf32>
    %21 = arith.maximumf %19, %20 : vector<128x4xf32>
    %cst_18 = arith.constant dense<0xFF800000> : vector<128xf32>
    %22 = vector.multi_reduction <maximumf>, %21, %cst_18 [1] : vector<128x4xf32> to vector<128xf32>
    %23 = vector.shape_cast %22 : vector<128xf32> to vector<128x1xf32>
    %24 = vector.broadcast %23 : vector<128x1xf32> to vector<128x4xf32>
    %25 = arith.subf %21, %24 : vector<128x4xf32>
    %26 = math.exp %25 : vector<128x4xf32>
    %cst_19 = arith.constant dense<0.000000e+00> : vector<128xf32>
    %27 = vector.multi_reduction <add>, %26, %cst_19 [1] : vector<128x4xf32> to vector<128xf32>
    %28 = vector.shape_cast %27 : vector<128xf32> to vector<128x1xf32>
    %29 = tpu.reciprocal %28 {approx = true} : vector<128x1xf32> -> vector<128x1xf32>
    %30 = vector.broadcast %29 : vector<128x1xf32> to vector<128x4xf32>
    %31 = arith.mulf %26, %30 : vector<128x4xf32>
    %c0_20 = arith.constant 0 : index
    %c0_21 = arith.constant 0 : index
    %32 = vector.load %arg2[%c0_20, %c0_21] : memref<4x32xf32, #tpu.memory_space<vmem>>, vector<4x32xf32>
    %cst_22 = arith.constant dense<0.000000e+00> : vector<128x32xf32>
    %33 = tpu.matmul %31, %32, %cst_22 {dimension_numbers = #tpu.dot_dimension_numbers<[1], [0], [0], [1], [0, 0, 1, 1], [], []>} : vector<128x4xf32>, vector<4x32xf32>, vector<128x32xf32> -> vector<128x32xf32>
    %34 = arith.mulf %0, %33 : vector<128x32xf32>
    %c0_23 = arith.constant 0 : index
    %c0_24 = arith.constant 0 : index
    %35 = vector.load %arg9[%c0_23, %c0_24] : memref<32x128xf32, #tpu.memory_space<vmem>>, vector<32x128xf32>
    %cst_25 = arith.constant dense<0.000000e+00> : vector<128x128xf32>
    %36 = tpu.matmul %34, %35, %cst_25 {dimension_numbers = #tpu.dot_dimension_numbers<[1], [0], [0], [1], [0, 0, 1, 1], [], []>} : vector<128x32xf32>, vector<32x128xf32>, vector<128x128xf32> -> vector<128x128xf32>
    %c0_26 = arith.constant 0 : index
    %c0_27 = arith.constant 0 : index
    %37 = vector.load %arg10[%c0_26, %c0_27] : memref<1x128xf32, #tpu.memory_space<vmem>>, vector<1x128xf32>
    %38 = vector.broadcast %37 : vector<1x128xf32> to vector<128x128xf32>
    %39 = arith.addf %36, %38 : vector<128x128xf32>
    %cst_28 = arith.constant 0.000000e+00 : f32
    %40 = vector.broadcast %cst_28 : f32 to vector<128x128xf32>
    %41 = arith.maximumf %39, %40 : vector<128x128xf32>
    %c0_29 = arith.constant 0 : index
    %c0_30 = arith.constant 0 : index
    %42 = vector.load %arg11[%c0_29, %c0_30] : memref<128x128xf32, #tpu.memory_space<vmem>>, vector<128x128xf32>
    %cst_31 = arith.constant dense<0.000000e+00> : vector<128x128xf32>
    %43 = tpu.matmul %41, %42, %cst_31 {dimension_numbers = #tpu.dot_dimension_numbers<[1], [0], [0], [1], [0, 0, 1, 1], [], []>} : vector<128x128xf32>, vector<128x128xf32>, vector<128x128xf32> -> vector<128x128xf32>
    %c0_32 = arith.constant 0 : index
    %c0_33 = arith.constant 0 : index
    %44 = vector.load %arg12[%c0_32, %c0_33] : memref<1x128xf32, #tpu.memory_space<vmem>>, vector<1x128xf32>
    %45 = vector.broadcast %44 : vector<1x128xf32> to vector<128x128xf32>
    %46 = arith.addf %43, %45 : vector<128x128xf32>
    %cst_34 = arith.constant 0.000000e+00 : f32
    %47 = vector.broadcast %cst_34 : f32 to vector<128x128xf32>
    %48 = arith.maximumf %46, %47 : vector<128x128xf32>
    %c0_35 = arith.constant 0 : index
    %c0_36 = arith.constant 0 : index
    %49 = vector.load %arg13[%c0_35, %c0_36] : memref<128x128xf32, #tpu.memory_space<vmem>>, vector<128x128xf32>
    tpu.vector_store %arg13[%c0_35, %c0_36], %48 {strides = array<i32>} : memref<128x128xf32, #tpu.memory_space<vmem>>, vector<128x128xf32>,
    return
  }
  func.func @transform_0(%arg0: i32) -> (i32, i32) {
    %c0_i32 = arith.constant 0 : i32
    %c0_i32_0 = arith.constant 0 : i32
    return %arg0, %c0_i32 : i32, i32
  }
  func.func @transform_1(%arg0: i32) -> (i32, i32) {
    %c0_i32 = arith.constant 0 : i32
    %c0_i32_0 = arith.constant 0 : i32
    %c0_i32_1 = arith.constant 0 : i32
    return %c0_i32, %c0_i32_0 : i32, i32
  }
  func.func @transform_2(%arg0: i32) -> (i32, i32) {
    %c0_i32 = arith.constant 0 : i32
    %c0_i32_0 = arith.constant 0 : i32
    %c0_i32_1 = arith.constant 0 : i32
    return %c0_i32, %c0_i32_0 : i32, i32
  }
  func.func @transform_3(%arg0: i32) -> (i32, i32) {
    %c0_i32 = arith.constant 0 : i32
    %c0_i32_0 = arith.constant 0 : i32
    %c0_i32_1 = arith.constant 0 : i32
    return %c0_i32, %c0_i32_0 : i32, i32
  }
  func.func @transform_4(%arg0: i32) -> (i32, i32) {
    %c0_i32 = arith.constant 0 : i32
    %c0_i32_0 = arith.constant 0 : i32
    %c0_i32_1 = arith.constant 0 : i32
    return %c0_i32, %c0_i32_0 : i32, i32
  }
  func.func @transform_5(%arg0: i32) -> (i32, i32) {
    %c0_i32 = arith.constant 0 : i32
    %c0_i32_0 = arith.constant 0 : i32
    %c0_i32_1 = arith.constant 0 : i32
    return %c0_i32, %c0_i32_0 : i32, i32
  }
  func.func @transform_6(%arg0: i32) -> (i32, i32) {
    %c0_i32 = arith.constant 0 : i32
    %c0_i32_0 = arith.constant 0 : i32
    %c0_i32_1 = arith.constant 0 : i32
    return %c0_i32, %c0_i32_0 : i32, i32
  }
  func.func @transform_7(%arg0: i32) -> (i32, i32) {
    %c0_i32 = arith.constant 0 : i32
    %c0_i32_0 = arith.constant 0 : i32
    %c0_i32_1 = arith.constant 0 : i32
    return %c0_i32, %c0_i32_0 : i32, i32
  }
  func.func @transform_8(%arg0: i32) -> (i32, i32) {
    %c0_i32 = arith.constant 0 : i32
    %c0_i32_0 = arith.constant 0 : i32
    %c0_i32_1 = arith.constant 0 : i32
    return %c0_i32, %c0_i32_0 : i32, i32
  }
  func.func @transform_9(%arg0: i32) -> (i32, i32) {
    %c0_i32 = arith.constant 0 : i32
    %c0_i32_0 = arith.constant 0 : i32
    %c0_i32_1 = arith.constant 0 : i32
    return %c0_i32, %c0_i32_0 : i32, i32
  }
  func.func @transform_10(%arg0: i32) -> (i32, i32) {
    %c0_i32 = arith.constant 0 : i32
    %c0_i32_0 = arith.constant 0 : i32
    %c0_i32_1 = arith.constant 0 : i32
    return %c0_i32, %c0_i32_0 : i32, i32
  }
  func.func @transform_11(%arg0: i32) -> (i32, i32) {
    %c0_i32 = arith.constant 0 : i32
    %c0_i32_0 = arith.constant 0 : i32
    %c0_i32_1 = arith.constant 0 : i32
    return %c0_i32, %c0_i32_0 : i32, i32
  }
  func.func @transform_12(%arg0: i32) -> (i32, i32) {
    %c0_i32 = arith.constant 0 : i32
    %c0_i32_0 = arith.constant 0 : i32
    return %arg0, %c0_i32 : i32, i32
  }
}

</mosaic_0001>

<llo_original>
// kernel: tpu_custom_call.1
$region0: #{tpu_custom_call.1}
  #allocation0 [shape = 'u32[]', space=smem, size = 0x4, offset = 0x4, fixed_abs, tag = 'smem constant byte address 0x4 - core index']
  #allocation1 [shape = 'u32[72,128]{1,0:T(1,128)}', space=vmem, size = 0x9000, scoped, tag = 'internal scratch']
  %s0 = inlined_call_operand.vmem [shape: f32[384,32], index: 0, kind: input, shape index: {}]
  %s1 = inlined_call_operand.vmem [shape: f32[4,32], index: 1, kind: input, shape index: {}]
  %s2 = inlined_call_operand.vmem [shape: f32[32,64], index: 2, kind: input, shape index: {}]
  %s3 = inlined_call_operand.vmem [shape: f32[1,64], index: 3, kind: input, shape index: {}]
  %s4 = inlined_call_operand.vmem [shape: f32[64,32], index: 4, kind: input, shape index: {}]
  %s5 = inlined_call_operand.vmem [shape: f32[1,32], index: 5, kind: input, shape index: {}]
  %s6 = inlined_call_operand.vmem [shape: f32[32,4], index: 6, kind: input, shape index: {}]
  %s7 = inlined_call_operand.vmem [shape: f32[1,4], index: 7, kind: input, shape index: {}]
  %s8 = inlined_call_operand.vmem [shape: f32[32,128], index: 8, kind: input, shape index: {}]
  %s9 = inlined_call_operand.vmem [shape: f32[1,128], index: 9, kind: input, shape index: {}]
  %s10 = inlined_call_operand.vmem [shape: f32[128,128], index: 10, kind: input, shape index: {}]
  %s11 = inlined_call_operand.vmem [shape: f32[1,128], index: 11, kind: input, shape index: {}]
  %s12 = inlined_call_operand.hbm [shape: f32[384,128], index: 12, kind: output, shape index: {}]
  %s13 = sld [smem:[#allocation0]]
  $region81: #{tpu_custom_call.1} parent=0
    _
  %s15 = ssub.s32 1, %s13
  %s16 = scalar_select 0, %s15, %s13
  $region1: #{tpu_custom_call.1} parent=0
    #allocation2 [shape = 'u8[131072]{0}', space=vmem, size = 0x20000, scoped, tag = 'output window, operand 0']
    #allocation3 [shape = 's32[2]{0}', space=sflag, size = 0x8, scoped, tag = 'scoped memory for tpu_custom_call.1']
    %17 = vsyncpa [#allocation3], 0
    %s18 = scalar_lea.sflag [#allocation3], 1
    %19 = vsyncpa %s18, 0
    loop: start=0, step=1, limit=5
    $region2: #{tpu_custom_call.1} parent=1 // loop_pre_header
      _
    $region3: #{tpu_custom_call.1} parent=1 // loop_header
      %s21 = sphi 0, %s25
      %p22 = scmp.ge.s32.totalorder %s21, 5
      %s31 = sphi 0, %s33
      %s34 = sphi 0, %s31
      %s35 = sphi 0, %s34
      %s51 = sphi 0, %s35
      %s55 = sphi 0, %s55
      %s57 = sphi 0, %s55
      %s58 = sphi 0, %s57
      %s72 = sphi 0, %s58
      %s76 = sphi 0, %s76
      %s78 = sphi 0, %s76
      %s79 = sphi 0, %s78
      %s93 = sphi 0, %s79
      %s97 = sphi 0, %s97
      %s99 = sphi 0, %s97
      %s100 = sphi 0, %s99
      %s114 = sphi 0, %s100
      %s118 = sphi 0, %s118
      %s120 = sphi 0, %s118
      %s121 = sphi 0, %s120
      %s135 = sphi 0, %s121
      %s139 = sphi 0, %s139
      %s141 = sphi 0, %s139
      %s142 = sphi 0, %s141
      %s156 = sphi 0, %s142
      %s160 = sphi 0, %s160
      %s162 = sphi 0, %s160
      %s163 = sphi 0, %s162
      %s177 = sphi 0, %s163
      %s181 = sphi 0, %s181
      %s183 = sphi 0, %s181
      %s184 = sphi 0, %s183
      %s198 = sphi 0, %s184
      %s202 = sphi 0, %s202
      %s204 = sphi 0, %s202
      %s205 = sphi 0, %s204
      %s219 = sphi 0, %s205
      %s223 = sphi 0, %s223
      %s225 = sphi 0, %s223
      %s226 = sphi 0, %s225
      %s240 = sphi 0, %s226
      %s244 = sphi 0, %s244
      %s246 = sphi 0, %s244
      %s247 = sphi 0, %s246
      %s261 = sphi 0, %s247
      %s265 = sphi 0, %s265
      %s267 = sphi 0, %s265
      %s268 = sphi 0, %s267
      %s282 = sphi 0, %s268
      %s288 = sphi 0, %s290
      %s291 = sphi 0, %s288
      %s292 = sphi 0, %s291
      %s308 = sphi 0, %s292
    $region4: #{tpu_custom_call.1} parent=1 // loop_header_branch
      %24 = sbr.rel (%p22) target = $region8
    $region5: #{tpu_custom_call.1} parent=1 // loop_body
      %s26 = ssub.s32 %s21, 1
      %s27 = ssub.s32 %s21, 2
      %s28 = sadd.s32 %s21, 1
      %s29 = ssub.s32 %s21, %s28
      %p30 = scmp.eq.s32.totalorder %s29, 0
      %s32 = sadd.s32 %s31, 1
      %s33 = scalar_select %p30, %s31, %s32
      %p36 = pneg %p30
      %p37 = scmp.eq.s32.totalorder %s21, 2
      %p38 = por %p36, %p37
      %p39 = scmp.ne.s32.totalorder %s31, %s34
      %p40 = scmp.eq.s32.totalorder %s21, 0
      %p41 = por %p39, %p40
      %p42 = scmp.ne.s32.totalorder %s31, %s34
      %p43 = scmp.eq.s32.totalorder %s26, 2
      %p44 = por %p42, %p43
      %p45 = scmp.ne.s32.totalorder %s34, %s35
      %p46 = scmp.eq.s32.totalorder %s26, 0
      %p47 = por %p45, %p46
      %p48 = scmp.ne.s32.totalorder %s34, %s35
      %p49 = scmp.eq.s32.totalorder %s27, 2
      %p50 = por %p48, %p49
      %p52 = scmp.ne.s32.totalorder %s35, %s51
      %p53 = scmp.eq.s32.totalorder %s27, 0
      %p54 = por %p52, %p53
      %s56 = sadd.s32 %s55, 1
      %p59 = scmp.eq.s32.totalorder %s21, 2
      %p60 = scmp.ne.s32.totalorder %s55, %s57
      %p61 = scmp.eq.s32.totalorder %s21, 0
      %p62 = por %p60, %p61
      %p63 = scmp.ne.s32.totalorder %s55, %s57
      %p64 = scmp.eq.s32.totalorder %s26, 2
      %p65 = por %p63, %p64
      %p66 = scmp.ne.s32.totalorder %s57, %s58
      %p67 = scmp.eq.s32.totalorder %s26, 0
      %p68 = por %p66, %p67
      %p69 = scmp.ne.s32.totalorder %s57, %s58
      %p70 = scmp.eq.s32.totalorder %s27, 2
      %p71 = por %p69, %p70
      %p73 = scmp.ne.s32.totalorder %s58, %s72
      %p74 = scmp.eq.s32.totalorder %s27, 0
      %p75 = por %p73, %p74
      %s77 = sadd.s32 %s76, 1
      %p80 = scmp.eq.s32.totalorder %s21, 2
      %p81 = scmp.ne.s32.totalorder %s76, %s78
      %p82 = scmp.eq.s32.totalorder %s21, 0
      %p83 = por %p81, %p82
      %p84 = scmp.ne.s32.totalorder %s76, %s78
      %p85 = scmp.eq.s32.totalorder %s26, 2
      %p86 = por %p84, %p85
      %p87 = scmp.ne.s32.totalorder %s78, %s79
      %p88 = scmp.eq.s32.totalorder %s26, 0
      %p89 = por %p87, %p88
      %p90 = scmp.ne.s32.totalorder %s78, %s79
      %p91 = scmp.eq.s32.totalorder %s27, 2
      %p92 = por %p90, %p91
      %p94 = scmp.ne.s32.totalorder %s79, %s93
      %p95 = scmp.eq.s32.totalorder %s27, 0
      %p96 = por %p94, %p95
      %s98 = sadd.s32 %s97, 1
      %p101 = scmp.eq.s32.totalorder %s21, 2
      %p102 = scmp.ne.s32.totalorder %s97, %s99
      %p103 = scmp.eq.s32.totalorder %s21, 0
      %p104 = por %p102, %p103
      %p105 = scmp.ne.s32.totalorder %s97, %s99
      %p106 = scmp.eq.s32.totalorder %s26, 2
      %p107 = por %p105, %p106
      %p108 = scmp.ne.s32.totalorder %s99, %s100
      %p109 = scmp.eq.s32.totalorder %s26, 0
      %p110 = por %p108, %p109
      %p111 = scmp.ne.s32.totalorder %s99, %s100
      %p112 = scmp.eq.s32.totalorder %s27, 2
      %p113 = por %p111, %p112
      %p115 = scmp.ne.s32.totalorder %s100, %s114
      %p116 = scmp.eq.s32.totalorder %s27, 0
      %p117 = por %p115, %p116
      %s119 = sadd.s32 %s118, 1
      %p122 = scmp.eq.s32.totalorder %s21, 2
      %p123 = scmp.ne.s32.totalorder %s118, %s120
      %p124 = scmp.eq.s32.totalorder %s21, 0
      %p125 = por %p123, %p124
      %p126 = scmp.ne.s32.totalorder %s118, %s120
      %p127 = scmp.eq.s32.totalorder %s26, 2
      %p128 = por %p126, %p127
      %p129 = scmp.ne.s32.totalorder %s120, %s121
      %p130 = scmp.eq.s32.totalorder %s26, 0
      %p131 = por %p129, %p130
      %p132 = scmp.ne.s32.totalorder %s120, %s121
      %p133 = scmp.eq.s32.totalorder %s27, 2
      %p134 = por %p132, %p133
      %p136 = scmp.ne.s32.totalorder %s121, %s135
      %p137 = scmp.eq.s32.totalorder %s27, 0
      %p138 = por %p136, %p137
      %s140 = sadd.s32 %s139, 1
      %p143 = scmp.eq.s32.totalorder %s21, 2
      %p144 = scmp.ne.s32.totalorder %s139, %s141
      %p145 = scmp.eq.s32.totalorder %s21, 0
      %p146 = por %p144, %p145
      %p147 = scmp.ne.s32.totalorder %s139, %s141
      %p148 = scmp.eq.s32.totalorder %s26, 2
      %p149 = por %p147, %p148
      %p150 = scmp.ne.s32.totalorder %s141, %s142
      %p151 = scmp.eq.s32.totalorder %s26, 0
      %p152 = por %p150, %p151
      %p153 = scmp.ne.s32.totalorder %s141, %s142
      %p154 = scmp.eq.s32.totalorder %s27, 2
      %p155 = por %p153, %p154
      %p157 = scmp.ne.s32.totalorder %s142, %s156
      %p158 = scmp.eq.s32.totalorder %s27, 0
      %p159 = por %p157, %p158
      %s161 = sadd.s32 %s160, 1
      %p164 = scmp.eq.s32.totalorder %s21, 2
      %p165 = scmp.ne.s32.totalorder %s160, %s162
      %p166 = scmp.eq.s32.totalorder %s21, 0
      %p167 = por %p165, %p166
      %p168 = scmp.ne.s32.totalorder %s160, %s162
      %p169 = scmp.eq.s32.totalorder %s26, 2
      %p170 = por %p168, %p169
      %p171 = scmp.ne.s32.totalorder %s162, %s163
      %p172 = scmp.eq.s32.totalorder %s26, 0
      %p173 = por %p171, %p172
      %p174 = scmp.ne.s32.totalorder %s162, %s163
      %p175 = scmp.eq.s32.totalorder %s27, 2
      %p176 = por %p174, %p175
      %p178 = scmp.ne.s32.totalorder %s163, %s177
      %p179 = scmp.eq.s32.totalorder %s27, 0
      %p180 = por %p178, %p179
      %s182 = sadd.s32 %s181, 1
      %p185 = scmp.eq.s32.totalorder %s21, 2
      %p186 = scmp.ne.s32.totalorder %s181, %s183
      %p187 = scmp.eq.s32.totalorder %s21, 0
      %p188 = por %p186, %p187
      %p189 = scmp.ne.s32.totalorder %s181, %s183
      %p190 = scmp.eq.s32.totalorder %s26, 2
      %p191 = por %p189, %p190
      %p192 = scmp.ne.s32.totalorder %s183, %s184
      %p193 = scmp.eq.s32.totalorder %s26, 0
      %p194 = por %p192, %p193
      %p195 = scmp.ne.s32.totalorder %s183, %s184
      %p196 = scmp.eq.s32.totalorder %s27, 2
      %p197 = por %p195, %p196
      %p199 = scmp.ne.s32.totalorder %s184, %s198
      %p200 = scmp.eq.s32.totalorder %s27, 0
      %p201 = por %p199, %p200
      %s203 = sadd.s32 %s202, 1
      %p206 = scmp.eq.s32.totalorder %s21, 2
      %p207 = scmp.ne.s32.totalorder %s202, %s204
      %p208 = scmp.eq.s32.totalorder %s21, 0
      %p209 = por %p207, %p208
      %p210 = scmp.ne.s32.totalorder %s202, %s204
      %p211 = scmp.eq.s32.totalorder %s26, 2
      %p212 = por %p210, %p211
      %p213 = scmp.ne.s32.totalorder %s204, %s205
      %p214 = scmp.eq.s32.totalorder %s26, 0
      %p215 = por %p213, %p214
      %p216 = scmp.ne.s32.totalorder %s204, %s205
      %p217 = scmp.eq.s32.totalorder %s27, 2
      %p218 = por %p216, %p217
      %p220 = scmp.ne.s32.totalorder %s205, %s219
      %p221 = scmp.eq.s32.totalorder %s27, 0
      %p222 = por %p220, %p221
      %s224 = sadd.s32 %s223, 1
      %p227 = scmp.eq.s32.totalorder %s21, 2
      %p228 = scmp.ne.s32.totalorder %s223, %s225
      %p229 = scmp.eq.s32.totalorder %s21, 0
      %p230 = por %p228, %p229
      %p231 = scmp.ne.s32.totalorder %s223, %s225
      %p232 = scmp.eq.s32.totalorder %s26, 2
      %p233 = por %p231, %p232
      %p234 = scmp.ne.s32.totalorder %s225, %s226
      %p235 = scmp.eq.s32.totalorder %s26, 0
      %p236 = por %p234, %p235
      %p237 = scmp.ne.s32.totalorder %s225, %s226
      %p238 = scmp.eq.s32.totalorder %s27, 2
      %p239 = por %p237, %p238
      %p241 = scmp.ne.s32.totalorder %s226, %s240
      %p242 = scmp.eq.s32.totalorder %s27, 0
      %p243 = por %p241, %p242
      %s245 = sadd.s32 %s244, 1
      %p248 = scmp.eq.s32.totalorder %s21, 2
      %p249 = scmp.ne.s32.totalorder %s244, %s246
      %p250 = scmp.eq.s32.totalorder %s21, 0
      %p251 = por %p249, %p250
      %p252 = scmp.ne.s32.totalorder %s244, %s246
      %p253 = scmp.eq.s32.totalorder %s26, 2
      %p254 = por %p252, %p253
      %p255 = scmp.ne.s32.totalorder %s246, %s247
      %p256 = scmp.eq.s32.totalorder %s26, 0
      %p257 = por %p255, %p256
      %p258 = scmp.ne.s32.totalorder %s246, %s247
      %p259 = scmp.eq.s32.totalorder %s27, 2
      %p260 = por %p258, %p259
      %p262 = scmp.ne.s32.totalorder %s247, %s261
      %p263 = scmp.eq.s32.totalorder %s27, 0
      %p264 = por %p262, %p263
      %s266 = sadd.s32 %s265, 1
      %p269 = scmp.eq.s32.totalorder %s21, 2
      %p270 = scmp.ne.s32.totalorder %s265, %s267
      %p271 = scmp.eq.s32.totalorder %s21, 0
      %p272 = por %p270, %p271
      %p273 = scmp.ne.s32.totalorder %s265, %s267
      %p274 = scmp.eq.s32.totalorder %s26, 2
      %p275 = por %p273, %p274
      %p276 = scmp.ne.s32.totalorder %s267, %s268
      %p277 = scmp.eq.s32.totalorder %s26, 0
      %p278 = por %p276, %p277
      %p279 = scmp.ne.s32.totalorder %s267, %s268
      %p280 = scmp.eq.s32.totalorder %s27, 2
      %p281 = por %p279, %p280
      %p283 = scmp.ne.s32.totalorder %s268, %s282
      %p284 = scmp.eq.s32.totalorder %s27, 0
      %p285 = por %p283, %p284
      %s286 = ssub.s32 %s21, %s28
      %p287 = scmp.eq.s32.totalorder %s286, 0
      %s289 = sadd.s32 %s288, 1
      %s290 = scalar_select %p287, %s288, %s289
      %p293 = pneg %p287
      %p294 = scmp.eq.s32.totalorder %s21, 2
      %p295 = por %p293, %p294
      %p296 = scmp.ne.s32.totalorder %s288, %s291
      %p297 = scmp.eq.s32.totalorder %s21, 0
      %p298 = por %p296, %p297
      %p299 = scmp.ne.s32.totalorder %s288, %s291
      %p300 = scmp.eq.s32.totalorder %s26, 2
      %p301 = por %p299, %p300
      %p302 = scmp.ne.s32.totalorder %s291, %s292
      %p303 = scmp.eq.s32.totalorder %s26, 0
      %p304 = por %p302, %p303
      %p305 = scmp.ne.s32.totalorder %s291, %s292
      %p306 = scmp.eq.s32.totalorder %s27, 2
      %p307 = por %p305, %p306
      %p309 = scmp.ne.s32.totalorder %s292, %s308
      %p310 = scmp.eq.s32.totalorder %s27, 0
      %p311 = por %p309, %p310
      %p312 = scmp.le.s32.totalorder 1, %s21
      %p313 = scmp.lt.s32.totalorder %s21, 4
      %p314 = pnand %p312, %p313
      %p315 = pneg %p314
      // Predicated region
      $region9: #{tpu_custom_call.1} parent=5 // pred_check
        _
      $region10: #{tpu_custom_call.1} parent=5 // pred_check_branch
        %317 = sbr.rel (%p314) target = $region12
      $region11: #{tpu_custom_call.1} parent=5 // pred_region
        %s318 = ssub.s32 %s21, 1
        // Predicated region
        $region13: #{tpu_custom_call.1} parent=11 // pred_check
          %p319 = pneg %p68
        $region14: #{tpu_custom_call.1} parent=11 // pred_check_branch
          %321 = sbr.rel (%p319) target = $region16
        $region15: #{tpu_custom_call.1} parent=11 // pred_region
          _
        $region16: #{tpu_custom_call.1} parent=11 // pred_fallthru
          _
        // Predicated region
        $region17: #{tpu_custom_call.1} parent=11 // pred_check
          %p322 = pneg %p89
        $region18: #{tpu_custom_call.1} parent=11 // pred_check_branch
          %324 = sbr.rel (%p322) target = $region20
        $region19: #{tpu_custom_call.1} parent=11 // pred_region
          _
        $region20: #{tpu_custom_call.1} parent=11 // pred_fallthru
          _
        // Predicated region
        $region21: #{tpu_custom_call.1} parent=11 // pred_check
          %p325 = pneg %p110
        $region22: #{tpu_custom_call.1} parent=11 // pred_check_branch
          %327 = sbr.rel (%p325) target = $region24
        $region23: #{tpu_custom_call.1} parent=11 // pred_region
          _
        $region24: #{tpu_custom_call.1} parent=11 // pred_fallthru
          _
        // Predicated region
        $region25: #{tpu_custom_call.1} parent=11 // pred_check
          %p328 = pneg %p131
        $region26: #{tpu_custom_call.1} parent=11 // pred_check_branch
          %330 = sbr.rel (%p328) target = $region28
        $region27: #{tpu_custom_call.1} parent=11 // pred_region
          _
        $region28: #{tpu_custom_call.1} parent=11 // pred_fallthru
          _
        // Predicated region
        $region29: #{tpu_custom_call.1} parent=11 // pred_check
          %p331 = pneg %p152
        $region30: #{tpu_custom_call.1} parent=11 // pred_check_branch
          %333 = sbr.rel (%p331) target = $region32
        $region31: #{tpu_custom_call.1} parent=11 // pred_region
          _
        $region32: #{tpu_custom_call.1} parent=11 // pred_fallthru
          _
        // Predicated region
        $region33: #{tpu_custom_call.1} parent=11 // pred_check
          %p334 = pneg %p173
        $region34: #{tpu_custom_call.1} parent=11 // pred_check_branch
          %336 = sbr.rel (%p334) target = $region36
        $region35: #{tpu_custom_call.1} parent=11 // pred_region
          _
        $region36: #{tpu_custom_call.1} parent=11 // pred_fallthru
          _
        // Predicated region
        $region37: #{tpu_custom_call.1} parent=11 // pred_check
          %p337 = pneg %p194
        $region38: #{tpu_custom_call.1} parent=11 // pred_check_branch
          %339 = sbr.rel (%p337) target = $region40
        $region39: #{tpu_custom_call.1} parent=11 // pred_region
          _
        $region40: #{tpu_custom_call.1} parent=11 // pred_fallthru
          _
        // Predicated region
        $region41: #{tpu_custom_call.1} parent=11 // pred_check
          %p340 = pneg %p215
        $region42: #{tpu_custom_call.1} parent=11 // pred_check_branch
          %342 = sbr.rel (%p340) target = $region44
        $region43: #{tpu_custom_call.1} parent=11 // pred_region
          _
        $region44: #{tpu_custom_call.1} parent=11 // pred_fallthru
          _
        // Predicated region
        $region45: #{tpu_custom_call.1} parent=11 // pred_check
          %p343 = pneg %p236
        $region46: #{tpu_custom_call.1} parent=11 // pred_check_branch
          %345 = sbr.rel (%p343) target = $region48
        $region47: #{tpu_custom_call.1} parent=11 // pred_region
          _
        $region48: #{tpu_custom_call.1} parent=11 // pred_fallthru
          _
        // Predicated region
        $region49: #{tpu_custom_call.1} parent=11 // pred_check
          %p346 = pneg %p257
        $region50: #{tpu_custom_call.1} parent=11 // pred_check_branch
          %348 = sbr.rel (%p346) target = $region52
        $region51: #{tpu_custom_call.1} parent=11 // pred_region
          _
        $region52: #{tpu_custom_call.1} parent=11 // pred_fallthru
          _
        // Predicated region
        $region53: #{tpu_custom_call.1} parent=11 // pred_check
          %p349 = pneg %p278
        $region54: #{tpu_custom_call.1} parent=11 // pred_check_branch
          %351 = sbr.rel (%p349) target = $region56
        $region55: #{tpu_custom_call.1} parent=11 // pred_region
          _
        $region56: #{tpu_custom_call.1} parent=11 // pred_fallthru
          _
      $region12: #{tpu_custom_call.1} parent=5 // pred_fallthru
        _
      %p352 = scmp.lt.s32.totalorder %s21, 3
      // Predicated region
      $region57: #{tpu_custom_call.1} parent=5 // pred_check
        %p353 = pneg %p352
      $region58: #{tpu_custom_call.1} parent=5 // pred_check_branch
        %355 = sbr.rel (%p353) target = $region60
      $region59: #{tpu_custom_call.1} parent=5 // pred_region
        // Predicated region
        $region61: #{tpu_custom_call.1} parent=59 // pred_check
          %p356 = pneg %p41
        $region62: #{tpu_custom_call.1} parent=59 // pred_check_branch
          %358 = sbr.rel (%p356) target = $region64
        $region63: #{tpu_custom_call.1} parent=59 // pred_region
          %s359 = smul.u32 16, %s21
          %p360 = scmp.lt.s32.totalorder %s359, 47
          %s361 = scalar_select %p360, %s359, 47
          %s362 = smul.addr %s361, 8
          %s363 = scalar_lea.vmem %s0, %s362
          %s364 = smul.u32 16, %s21
        $region64: #{tpu_custom_call.1} parent=59 // pred_fallthru
          _
      $region60: #{tpu_custom_call.1} parent=5 // pred_fallthru
        _
      %p365 = scmp.le.s32.totalorder 1, %s21
      %p366 = scmp.lt.s32.totalorder %s21, 4
      %p367 = pnand %p365, %p366
      %p368 = pneg %p367
      // Predicated region
      $region65: #{tpu_custom_call.1} parent=5 // pred_check
        _
      $region66: #{tpu_custom_call.1} parent=5 // pred_check_branch
        %370 = sbr.rel (%p367) target = $region68
      $region67: #{tpu_custom_call.1} parent=5 // pred_region
        %s371 = ssub.s32 %s21, 1
        %s372 = smul.u32 16, %s26
        %p373 = scmp.lt.s32.totalorder %s372, 47
        %s374 = scalar_select %p373, %s372, 47
        %s375 = smul.addr %s374, 8
        %s376 = scalar_lea.vmem %s0, %s375
        %p377 = pneg %p47
        %p378 = pneg %p44
        %p379 = pneg %p68
        %p380 = pneg %p65
        %p381 = pneg %p89
        %p382 = pneg %p86
        %p383 = pneg %p110
        %p384 = pneg %p107
        %p385 = pneg %p131
        %p386 = pneg %p128
        %p387 = pneg %p152
        %p388 = pneg %p149
        %p389 = pneg %p173
        %p390 = pneg %p170
        %p391 = pneg %p194
        %p392 = pneg %p191
        %p393 = pneg %p215
        %p394 = pneg %p212
        %p395 = pneg %p236
        %p396 = pneg %p233
        %p397 = pneg %p257
        %p398 = pneg %p254
        %p399 = pneg %p278
        %p400 = pneg %p275
        %p401 = pneg %p304
        %p402 = pneg %p301
        %s403 = sand.u32 %s291, 1
        %s404 = scalar_lea.sflag [#allocation3], %s403
        %s405 = sand.u32 %s291, 1
        %s406 = smul.addr %s405, 128
        %s407 = scalar_lea.vmem [#allocation2], %s406
        %s408 = smul.u32 16, %s26
        %p409 = scmp.lt.s32.totalorder %s408, 47
        %s410 = scalar_select %p409, %s408, 47
        %s411 = smul.addr %s410, 8
        %s412 = scalar_lea.vmem %s0, %s411
        %s413 = smul.u32 16, %s26
        %s414 = smul.u32 16, %s26
        %v415 = vld [vmem:[%s412] sm:$0xff]
        %v416 = vld [vmem:[%s412 + $0x8] sm:$0xff]
        %v417 = vld [vmem:[%s412 + $0x10] sm:$0xff]
        %v418 = vld [vmem:[%s412 + $0x18] sm:$0xff]
        %v419 = vld [vmem:[%s412 + $0x20] sm:$0xff]
        %v420 = vld [vmem:[%s412 + $0x28] sm:$0xff]
        %v421 = vld [vmem:[%s412 + $0x30] sm:$0xff]
        %v422 = vld [vmem:[%s412 + $0x38] sm:$0xff]
        %v423 = vld [vmem:[%s412 + $0x40] sm:$0xff]
        %v424 = vld [vmem:[%s412 + $0x48] sm:$0xff]
        %v425 = vld [vmem:[%s412 + $0x50] sm:$0xff]
        %v426 = vld [vmem:[%s412 + $0x58] sm:$0xff]
        %v427 = vld [vmem:[%s412 + $0x60] sm:$0xff]
        %v428 = vld [vmem:[%s412 + $0x68] sm:$0xff]
        %v429 = vld [vmem:[%s412 + $0x70] sm:$0xff]
        %v430 = vld [vmem:[%s412 + $0x78] sm:$0xff]
        %v431 = vld [vmem:[%s2] sm:$0xff]
        %v432 = vld [vmem:[%s2 + $0x8] sm:$0xff]
        %v433 = vld [vmem:[%s2 + $0x10] sm:$0xff]
        %v434 = vld [vmem:[%s2 + $0x18] sm:$0xff]
        %v435 = vld [vmem:[%s3] sm:$0x1]
        %v437 = vperm.slane %v435, 0
        %vm439 = vcmask 261120
        %v441 = vsel %vm439, %v415, 0
        %v444 = vsel %vm439, %v416, 0
        %v447 = vsel %vm439, %v417, 0
        %v450 = vsel %vm439, %v418, 0
        %v453 = vsel %vm439, %v419, 0
        %v456 = vsel %vm439, %v420, 0
        %v459 = vsel %vm439, %v421, 0
        %v462 = vsel %vm439, %v422, 0
        %v465 = vsel %vm439, %v423, 0
        %v468 = vsel %vm439, %v424, 0
        %v471 = vsel %vm439, %v425, 0
        %v474 = vsel %vm439, %v426, 0
        %v477 = vsel %vm439, %v427, 0
        %v480 = vsel %vm439, %v428, 0
        %v483 = vsel %vm439, %v429, 0
        %v486 = vsel %vm439, %v430, 0
        %488 = vmatpush.msra.mxu0 0.0
        %489 = vmatpush.msra.mxu0 0.0
        %490 = vmatpush.msra.mxu0 0.0
        %491 = vmatpush.msra.mxu0 0.0
        %492 = vmatpush.msra.mxu0 0.0
        %493 = vmatpush.msra.mxu0 0.0
        %494 = vmatpush.msra.mxu0 0.0
        %495 = vmatpush.msra.mxu0 0.0
        %496 = vmatpush.msra.mxu0 0.0
        %497 = vmatpush.msra.mxu0 0.0
        %498 = vmatpush.msra.mxu0 0.0
        %499 = vmatpush.msra.mxu0 0.0
        %500 = vmatpush.msra.mxu0 %v434
        %501 = vmatpush.msra.mxu0 %v433
        %502 = vmatpush.msra.mxu0 %v432
        %503 = vmatpush.msra.mxu0 %v431
        %504 = vmatmul.f32.gmra.mxu0 %v441
        %v505 = vpop.f32.mrf.mxu0
        %v506 = vadd.f32 %v437, %v505
        %507 = vmatmul.f32.gmra.mxu0 %v444
        %v508 = vpop.f32.mrf.mxu0
        %v509 = vadd.f32 %v437, %v508
        %510 = vmatmul.f32.gmra.mxu0 %v447
        %v511 = vpop.f32.mrf.mxu0
        %v512 = vadd.f32 %v437, %v511
        %513 = vmatmul.f32.gmra.mxu0 %v450
        %v514 = vpop.f32.mrf.mxu0
        %v515 = vadd.f32 %v437, %v514
        %516 = vmatmul.f32.gmra.mxu0 %v453
        %v517 = vpop.f32.mrf.mxu0
        %v518 = vadd.f32 %v437, %v517
        %519 = vmatmul.f32.gmra.mxu0 %v456
        %v520 = vpop.f32.mrf.mxu0
        %v521 = vadd.f32 %v437, %v520
        %522 = vmatmul.f32.gmra.mxu0 %v459
        %v523 = vpop.f32.mrf.mxu0
        %v524 = vadd.f32 %v437, %v523
        %525 = vmatmul.f32.gmra.mxu0 %v462
        %v526 = vpop.f32.mrf.mxu0
        %v527 = vadd.f32 %v437, %v526
        %528 = vmatmul.f32.gmra.mxu0 %v465
        %v529 = vpop.f32.mrf.mxu0
        %v530 = vadd.f32 %v437, %v529
        %531 = vmatmul.f32.gmra.mxu0 %v468
        %v532 = vpop.f32.mrf.mxu0
        %v533 = vadd.f32 %v437, %v532
        %534 = vmatmul.f32.gmra.mxu0 %v471
        %v535 = vpop.f32.mrf.mxu0
        %v536 = vadd.f32 %v437, %v535
        %537 = vmatmul.f32.gmra.mxu0 %v474
        %v538 = vpop.f32.mrf.mxu0
        %v539 = vadd.f32 %v437, %v538
        %540 = vmatmul.f32.gmra.mxu0 %v477
        %v541 = vpop.f32.mrf.mxu0
        %v542 = vadd.f32 %v437, %v541
        %543 = vmatmul.f32.gmra.mxu0 %v480
        %v544 = vpop.f32.mrf.mxu0
        %v545 = vadd.f32 %v437, %v544
        %546 = vmatmul.f32.gmra.mxu0 %v483
        %v547 = vpop.f32.mrf.mxu0
        %v548 = vadd.f32 %v437, %v547
        %549 = vmatmul.f32.gmra.mxu0 %v486
        %v550 = vpop.f32.mrf.mxu0
        %v551 = vadd.f32 %v437, %v550
        %552 = vdwg.mxu0
        %v553 = vmax.f32 %v506, 0.0
        %v554 = vmax.f32 %v509, 0.0
        %v555 = vmax.f32 %v512, 0.0
        %v556 = vmax.f32 %v515, 0.0
        %v557 = vmax.f32 %v518, 0.0
        %v558 = vmax.f32 %v521, 0.0
        %v559 = vmax.f32 %v524, 0.0
        %v560 = vmax.f32 %v527, 0.0
        %v561 = vmax.f32 %v530, 0.0
        %v562 = vmax.f32 %v533, 0.0
        %v563 = vmax.f32 %v536, 0.0
        %v564 = vmax.f32 %v539, 0.0
        %v565 = vmax.f32 %v542, 0.0
        %v566 = vmax.f32 %v545, 0.0
        %v567 = vmax.f32 %v548, 0.0
        %v568 = vmax.f32 %v551, 0.0
        %v569 = vld [vmem:[%s4] sm:$0xff]
        %v570 = vld [vmem:[%s4 + $0x8] sm:$0xff]
        %v571 = vld [vmem:[%s4 + $0x10] sm:$0xff]
        %v572 = vld [vmem:[%s4 + $0x18] sm:$0xff]
        %v573 = vld [vmem:[%s4 + $0x20] sm:$0xff]
        %v574 = vld [vmem:[%s4 + $0x28] sm:$0xff]
        %v575 = vld [vmem:[%s4 + $0x30] sm:$0xff]
        %v576 = vld [vmem:[%s4 + $0x38] sm:$0xff]
        %v577 = vld [vmem:[%s5] sm:$0x1]
        %v579 = vperm.slane %v577, 0
        %vm581 = vcmask 523264
        %v583 = vsel %vm581, %v553, 0
        %v586 = vsel %vm581, %v554, 0
        %v589 = vsel %vm581, %v555, 0
        %v592 = vsel %vm581, %v556, 0
        %v595 = vsel %vm581, %v557, 0
        %v598 = vsel %vm581, %v558, 0
        %v601 = vsel %vm581, %v559, 0
        %v604 = vsel %vm581, %v560, 0
        %v607 = vsel %vm581, %v561, 0
        %v610 = vsel %vm581, %v562, 0
        %v613 = vsel %vm581, %v563, 0
        %v616 = vsel %vm581, %v564, 0
        %v619 = vsel %vm581, %v565, 0
        %v622 = vsel %vm581, %v566, 0
        %v625 = vsel %vm581, %v567, 0
        %v628 = vsel %vm581, %v568, 0
        %630 = vmatpush.msra.mxu0 0.0
        %631 = vmatpush.msra.mxu0 0.0
        %632 = vmatpush.msra.mxu0 0.0
        %633 = vmatpush.msra.mxu0 0.0
        %634 = vmatpush.msra.mxu0 0.0
        %635 = vmatpush.msra.mxu0 0.0
        %636 = vmatpush.msra.mxu0 0.0
        %637 = vmatpush.msra.mxu0 0.0
        %638 = vmatpush.msra.mxu0 %v576
        %639 = vmatpush.msra.mxu0 %v575
        %640 = vmatpush.msra.mxu0 %v574
        %641 = vmatpush.msra.mxu0 %v573
        %642 = vmatpush.msra.mxu0 %v572
        %643 = vmatpush.msra.mxu0 %v571
        %644 = vmatpush.msra.mxu0 %v570
        %645 = vmatpush.msra.mxu0 %v569
        %646 = vmatmul.f32.gmra.mxu0 %v583
        %v647 = vpop.f32.mrf.mxu0
        %v648 = vadd.f32 %v579, %v647
        %649 = vmatmul.f32.gmra.mxu0 %v586
        %v650 = vpop.f32.mrf.mxu0
        %v651 = vadd.f32 %v579, %v650
        %652 = vmatmul.f32.gmra.mxu0 %v589
        %v653 = vpop.f32.mrf.mxu0
        %v654 = vadd.f32 %v579, %v653
        %655 = vmatmul.f32.gmra.mxu0 %v592
        %v656 = vpop.f32.mrf.mxu0
        %v657 = vadd.f32 %v579, %v656
        %658 = vmatmul.f32.gmra.mxu0 %v595
        %v659 = vpop.f32.mrf.mxu0
        %v660 = vadd.f32 %v579, %v659
        %661 = vmatmul.f32.gmra.mxu0 %v598
        %v662 = vpop.f32.mrf.mxu0
        %v663 = vadd.f32 %v579, %v662
        %664 = vmatmul.f32.gmra.mxu0 %v601
        %v665 = vpop.f32.mrf.mxu0
        %v666 = vadd.f32 %v579, %v665
        %667 = vmatmul.f32.gmra.mxu0 %v604
        %v668 = vpop.f32.mrf.mxu0
        %v669 = vadd.f32 %v579, %v668
        %670 = vmatmul.f32.gmra.mxu0 %v607
        %v671 = vpop.f32.mrf.mxu0
        %v672 = vadd.f32 %v579, %v671
        %673 = vmatmul.f32.gmra.mxu0 %v610
        %v674 = vpop.f32.mrf.mxu0
        %v675 = vadd.f32 %v579, %v674
        %676 = vmatmul.f32.gmra.mxu0 %v613
        %v677 = vpop.f32.mrf.mxu0
        %v678 = vadd.f32 %v579, %v677
        %679 = vmatmul.f32.gmra.mxu0 %v616
        %v680 = vpop.f32.mrf.mxu0
        %v681 = vadd.f32 %v579, %v680
        %682 = vmatmul.f32.gmra.mxu0 %v619
        %v683 = vpop.f32.mrf.mxu0
        %v684 = vadd.f32 %v579, %v683
        %685 = vmatmul.f32.gmra.mxu0 %v622
        %v686 = vpop.f32.mrf.mxu0
        %v687 = vadd.f32 %v579, %v686
        %688 = vmatmul.f32.gmra.mxu0 %v625
        %v689 = vpop.f32.mrf.mxu0
        %v690 = vadd.f32 %v579, %v689
        %691 = vmatmul.f32.gmra.mxu0 %v628
        %v692 = vpop.f32.mrf.mxu0
        %v693 = vadd.f32 %v579, %v692
        %694 = vdwg.mxu0
        %v695 = vmax.f32 %v648, 0.0
        %v696 = vmax.f32 %v651, 0.0
        %v697 = vmax.f32 %v654, 0.0
        %v698 = vmax.f32 %v657, 0.0
        %v699 = vmax.f32 %v660, 0.0
        %v700 = vmax.f32 %v663, 0.0
        %v701 = vmax.f32 %v666, 0.0
        %v702 = vmax.f32 %v669, 0.0
        %v703 = vmax.f32 %v672, 0.0
        %v704 = vmax.f32 %v675, 0.0
        %v705 = vmax.f32 %v678, 0.0
        %v706 = vmax.f32 %v681, 0.0
        %v707 = vmax.f32 %v684, 0.0
        %v708 = vmax.f32 %v687, 0.0
        %v709 = vmax.f32 %v690, 0.0
        %v710 = vmax.f32 %v693, 0.0
        %v711 = vld [vmem:[%s6] sm:$0xff]
        %v712 = vld [vmem:[%s6 + $0x8] sm:$0xff]
        %v713 = vld [vmem:[%s6 + $0x10] sm:$0xff]
        %v714 = vld [vmem:[%s6 + $0x18] sm:$0xff]
        %v715 = vld [vmem:[%s7] sm:$0x1]
        %v717 = vperm.slane %v715, 0
        %v720 = vsel %vm439, %v695, 0
        %v723 = vsel %vm439, %v696, 0
        %v726 = vsel %vm439, %v697, 0
        %v729 = vsel %vm439, %v698, 0
        %v732 = vsel %vm439, %v699, 0
        %v735 = vsel %vm439, %v700, 0
        %v738 = vsel %vm439, %v701, 0
        %v741 = vsel %vm439, %v702, 0
        %v744 = vsel %vm439, %v703, 0
        %v747 = vsel %vm439, %v704, 0
        %v750 = vsel %vm439, %v705, 0
        %v753 = vsel %vm439, %v706, 0
        %v756 = vsel %vm439, %v707, 0
        %v759 = vsel %vm439, %v708, 0
        %v762 = vsel %vm439, %v709, 0
        %v765 = vsel %vm439, %v710, 0
        %767 = vmatpush.msra.mxu0 0.0
        %768 = vmatpush.msra.mxu0 0.0
        %769 = vmatpush.msra.mxu0 0.0
        %770 = vmatpush.msra.mxu0 0.0
        %771 = vmatpush.msra.mxu0 0.0
        %772 = vmatpush.msra.mxu0 0.0
        %773 = vmatpush.msra.mxu0 0.0
        %774 = vmatpush.msra.mxu0 0.0
        %775 = vmatpush.msra.mxu0 0.0
        %776 = vmatpush.msra.mxu0 0.0
        %777 = vmatpush.msra.mxu0 0.0
        %778 = vmatpush.msra.mxu0 0.0
        %779 = vmatpush.msra.mxu0 %v714
        %780 = vmatpush.msra.mxu0 %v713
        %781 = vmatpush.msra.mxu0 %v712
        %782 = vmatpush.msra.mxu0 %v711
        %783 = vmatmul.f32.gmra.mxu0 %v720
        %v784 = vpop.f32.mrf.mxu0
        %v785 = vadd.f32 %v717, %v784
        %786 = vmatmul.f32.gmra.mxu0 %v723
        %v787 = vpop.f32.mrf.mxu0
        %v788 = vadd.f32 %v717, %v787
        %789 = vmatmul.f32.gmra.mxu0 %v726
        %v790 = vpop.f32.mrf.mxu0
        %v791 = vadd.f32 %v717, %v790
        %792 = vmatmul.f32.gmra.mxu0 %v729
        %v793 = vpop.f32.mrf.mxu0
        %v794 = vadd.f32 %v717, %v793
        %795 = vmatmul.f32.gmra.mxu0 %v732
        %v796 = vpop.f32.mrf.mxu0
        %v797 = vadd.f32 %v717, %v796
        %798 = vmatmul.f32.gmra.mxu0 %v735
        %v799 = vpop.f32.mrf.mxu0
        %v800 = vadd.f32 %v717, %v799
        %801 = vmatmul.f32.gmra.mxu0 %v738
        %v802 = vpop.f32.mrf.mxu0
        %v803 = vadd.f32 %v717, %v802
        %804 = vmatmul.f32.gmra.mxu0 %v741
        %v805 = vpop.f32.mrf.mxu0
        %v806 = vadd.f32 %v717, %v805
        %807 = vmatmul.f32.gmra.mxu0 %v744
        %v808 = vpop.f32.mrf.mxu0
        %v809 = vadd.f32 %v717, %v808
        %810 = vmatmul.f32.gmra.mxu0 %v747
        %v811 = vpop.f32.mrf.mxu0
        %v812 = vadd.f32 %v717, %v811
        %813 = vmatmul.f32.gmra.mxu0 %v750
        %v814 = vpop.f32.mrf.mxu0
        %v815 = vadd.f32 %v717, %v814
        %816 = vmatmul.f32.gmra.mxu0 %v753
        %v817 = vpop.f32.mrf.mxu0
        %v818 = vadd.f32 %v717, %v817
        %819 = vmatmul.f32.gmra.mxu0 %v756
        %v820 = vpop.f32.mrf.mxu0
        %v821 = vadd.f32 %v717, %v820
        %822 = vmatmul.f32.gmra.mxu0 %v759
        %v823 = vpop.f32.mrf.mxu0
        %v824 = vadd.f32 %v717, %v823
        %825 = vmatmul.f32.gmra.mxu0 %v762
        %v826 = vpop.f32.mrf.mxu0
        %v827 = vadd.f32 %v717, %v826
        %828 = vmatmul.f32.gmra.mxu0 %v765
        %v829 = vpop.f32.mrf.mxu0
        %v830 = vadd.f32 %v717, %v829
        %831 = vdwg.mxu0
        %v832 = vmax.f32 %v785, 0.0
        %v833 = vmax.f32 %v788, 0.0
        %v834 = vmax.f32 %v791, 0.0
        %v835 = vmax.f32 %v794, 0.0
        %v836 = vmax.f32 %v797, 0.0
        %v837 = vmax.f32 %v800, 0.0
        %v838 = vmax.f32 %v803, 0.0
        %v839 = vmax.f32 %v806, 0.0
        %v840 = vmax.f32 %v809, 0.0
        %v841 = vmax.f32 %v812, 0.0
        %v842 = vmax.f32 %v815, 0.0
        %v843 = vmax.f32 %v818, 0.0
        %v844 = vmax.f32 %v821, 0.0
        %v845 = vmax.f32 %v824, 0.0
        %v846 = vmax.f32 %v827, 0.0
        %v847 = vmax.f32 %v830, 0.0
        %vm848 = vcmask 31744
        %v849 = vsel %vm848, %v832, -inf
        %850 = vmax.xlane.f32.xlu0 %v849
        %v851 = vpop.xlane.xlu0 %850
        %v852 = vsel %vm848, %v833, -inf
        %853 = vmax.xlane.f32.xlu0 %v852
        %v854 = vpop.xlane.xlu0 %853
        %v855 = vsel %vm848, %v834, -inf
        %856 = vmax.xlane.f32.xlu0 %v855
        %v857 = vpop.xlane.xlu0 %856
        %v858 = vsel %vm848, %v835, -inf
        %859 = vmax.xlane.f32.xlu0 %v858
        %v860 = vpop.xlane.xlu0 %859
        %v861 = vsel %vm848, %v836, -inf
        %862 = vmax.xlane.f32.xlu0 %v861
        %v863 = vpop.xlane.xlu0 %862
        %v864 = vsel %vm848, %v837, -inf
        %865 = vmax.xlane.f32.xlu0 %v864
        %v866 = vpop.xlane.xlu0 %865
        %v867 = vsel %vm848, %v838, -inf
        %868 = vmax.xlane.f32.xlu0 %v867
        %v869 = vpop.xlane.xlu0 %868
        %v870 = vsel %vm848, %v839, -inf
        %871 = vmax.xlane.f32.xlu0 %v870
        %v872 = vpop.xlane.xlu0 %871
        %v873 = vsel %vm848, %v840, -inf
        %874 = vmax.xlane.f32.xlu0 %v873
        %v875 = vpop.xlane.xlu0 %874
        %v876 = vsel %vm848, %v841, -inf
        %877 = vmax.xlane.f32.xlu0 %v876
        %v878 = vpop.xlane.xlu0 %877
        %v879 = vsel %vm848, %v842, -inf
        %880 = vmax.xlane.f32.xlu0 %v879
        %v881 = vpop.xlane.xlu0 %880
        %v882 = vsel %vm848, %v843, -inf
        %883 = vmax.xlane.f32.xlu0 %v882
        %v884 = vpop.xlane.xlu0 %883
        %v885 = vsel %vm848, %v844, -inf
        %886 = vmax.xlane.f32.xlu0 %v885
        %v887 = vpop.xlane.xlu0 %886
        %v888 = vsel %vm848, %v845, -inf
        %889 = vmax.xlane.f32.xlu0 %v888
        %v890 = vpop.xlane.xlu0 %889
        %v891 = vsel %vm848, %v846, -inf
        %892 = vmax.xlane.f32.xlu0 %v891
        %v893 = vpop.xlane.xlu0 %892
        %v894 = vsel %vm848, %v847, -inf
        %895 = vmax.xlane.f32.xlu0 %v894
        %v896 = vpop.xlane.xlu0 %895
        %v897 = vsub.f32 %v832, %v851
        %v898 = vsub.f32 %v833, %v854
        %v899 = vsub.f32 %v834, %v857
        %v900 = vsub.f32 %v835, %v860
        %v901 = vsub.f32 %v836, %v863
        %v902 = vsub.f32 %v837, %v866
        %v903 = vsub.f32 %v838, %v869
        %v904 = vsub.f32 %v839, %v872
        %v905 = vsub.f32 %v840, %v875
        %v906 = vsub.f32 %v841, %v878
        %v907 = vsub.f32 %v842, %v881
        %v908 = vsub.f32 %v843, %v884
        %v909 = vsub.f32 %v844, %v887
        %v910 = vsub.f32 %v845, %v890
        %v911 = vsub.f32 %v846, %v893
        %v912 = vsub.f32 %v847, %v896
        %v913 = vmul.f32 %v897, 1.442695
        %v914 = vpow.pop %v913
        %v915 = vmul.f32 %v898, 1.442695
        %v916 = vpow.pop %v915
        %v917 = vmul.f32 %v899, 1.442695
        %v918 = vpow.pop %v917
        %v919 = vmul.f32 %v900, 1.442695
        %v920 = vpow.pop %v919
        %v921 = vmul.f32 %v901, 1.442695
        %v922 = vpow.pop %v921
        %v923 = vmul.f32 %v902, 1.442695
        %v924 = vpow.pop %v923
        %v925 = vmul.f32 %v903, 1.442695
        %v926 = vpow.pop %v925
        %v927 = vmul.f32 %v904, 1.442695
        %v928 = vpow.pop %v927
        %v929 = vmul.f32 %v905, 1.442695
        %v930 = vpow.pop %v929
        %v931 = vmul.f32 %v906, 1.442695
        %v932 = vpow.pop %v931
        %v933 = vmul.f32 %v907, 1.442695
        %v934 = vpow.pop %v933
        %v935 = vmul.f32 %v908, 1.442695
        %v936 = vpow.pop %v935
        %v937 = vmul.f32 %v909, 1.442695
        %v938 = vpow.pop %v937
        %v939 = vmul.f32 %v910, 1.442695
        %v940 = vpow.pop %v939
        %v941 = vmul.f32 %v911, 1.442695
        %v942 = vpow.pop %v941
        %v943 = vmul.f32 %v912, 1.442695
        %v944 = vpow.pop %v943
        %v945 = vsel %vm848, %v914, 0.0
        %946 = vadd.xlane.f32.xlu0 %v945
        %v947 = vpop.xlane.xlu0 %946
        %v948 = vsel %vm848, %v916, 0.0
        %949 = vadd.xlane.f32.xlu0 %v948
        %v950 = vpop.xlane.xlu0 %949
        %v951 = vsel %vm848, %v918, 0.0
        %952 = vadd.xlane.f32.xlu0 %v951
        %v953 = vpop.xlane.xlu0 %952
        %v954 = vsel %vm848, %v920, 0.0
        %955 = vadd.xlane.f32.xlu0 %v954
        %v956 = vpop.xlane.xlu0 %955
        %v957 = vsel %vm848, %v922, 0.0
        %958 = vadd.xlane.f32.xlu0 %v957
        %v959 = vpop.xlane.xlu0 %958
        %v960 = vsel %vm848, %v924, 0.0
        %961 = vadd.xlane.f32.xlu0 %v960
        %v962 = vpop.xlane.xlu0 %961
        %v963 = vsel %vm848, %v926, 0.0
        %964 = vadd.xlane.f32.xlu0 %v963
        %v965 = vpop.xlane.xlu0 %964
        %v966 = vsel %vm848, %v928, 0.0
        %967 = vadd.xlane.f32.xlu0 %v966
        %v968 = vpop.xlane.xlu0 %967
        %v969 = vsel %vm848, %v930, 0.0
        %970 = vadd.xlane.f32.xlu0 %v969
        %v971 = vpop.xlane.xlu0 %970
        %v972 = vsel %vm848, %v932, 0.0
        %973 = vadd.xlane.f32.xlu0 %v972
        %v974 = vpop.xlane.xlu0 %973
        %v975 = vsel %vm848, %v934, 0.0
        %976 = vadd.xlane.f32.xlu0 %v975
        %v977 = vpop.xlane.xlu0 %976
        %v978 = vsel %vm848, %v936, 0.0
        %979 = vadd.xlane.f32.xlu0 %v978
        %v980 = vpop.xlane.xlu0 %979
        %v981 = vsel %vm848, %v938, 0.0
        %982 = vadd.xlane.f32.xlu0 %v981
        %v983 = vpop.xlane.xlu0 %982
        %v984 = vsel %vm848, %v940, 0.0
        %985 = vadd.xlane.f32.xlu0 %v984
        %v986 = vpop.xlane.xlu0 %985
        %v987 = vsel %vm848, %v942, 0.0
        %988 = vadd.xlane.f32.xlu0 %v987
        %v989 = vpop.xlane.xlu0 %988
        %v990 = vsel %vm848, %v944, 0.0
        %991 = vadd.xlane.f32.xlu0 %v990
        %v992 = vpop.xlane.xlu0 %991
        %v993 = vrcp.pop %v947
        %v994 = vrcp.pop %v950
        %v995 = vrcp.pop %v953
        %v996 = vrcp.pop %v956
        %v997 = vrcp.pop %v959
        %v998 = vrcp.pop %v962
        %v999 = vrcp.pop %v965
        %v1000 = vrcp.pop %v968
        %v1001 = vrcp.pop %v971
        %v1002 = vrcp.pop %v974
        %v1003 = vrcp.pop %v977
        %v1004 = vrcp.pop %v980
        %v1005 = vrcp.pop %v983
        %v1006 = vrcp.pop %v986
        %v1007 = vrcp.pop %v989
        %v1008 = vrcp.pop %v992
        %v1009 = vmul.f32 %v914, %v993
        %v1010 = vmul.f32 %v916, %v994
        %v1011 = vmul.f32 %v918, %v995
        %v1012 = vmul.f32 %v920, %v996
        %v1013 = vmul.f32 %v922, %v997
        %v1014 = vmul.f32 %v924, %v998
        %v1015 = vmul.f32 %v926, %v999
        %v1016 = vmul.f32 %v928, %v1000
        %v1017 = vmul.f32 %v930, %v1001
        %v1018 = vmul.f32 %v932, %v1002
        %v1019 = vmul.f32 %v934, %v1003
        %v1020 = vmul.f32 %v936, %v1004
        %v1021 = vmul.f32 %v938, %v1005
        %v1022 = vmul.f32 %v940, %v1006
        %v1023 = vmul.f32 %v942, %v1007
        %v1024 = vmul.f32 %v944, %v1008
        %v1025 = vld [vmem:[%s1] sm:$0xf]
        %v1027 = vsel %vm848, %v1009, 0
        %v1030 = vsel %vm848, %v1010, 0
        %v1033 = vsel %vm848, %v1011, 0
        %v1036 = vsel %vm848, %v1012, 0
        %v1039 = vsel %vm848, %v1013, 0
        %v1042 = vsel %vm848, %v1014, 0
        %v1045 = vsel %vm848, %v1015, 0
        %v1048 = vsel %vm848, %v1016, 0
        %v1051 = vsel %vm848, %v1017, 0
        %v1054 = vsel %vm848, %v1018, 0
        %v1057 = vsel %vm848, %v1019, 0
        %v1060 = vsel %vm848, %v1020, 0
        %v1063 = vsel %vm848, %v1021, 0
        %v1066 = vsel %vm848, %v1022, 0
        %v1069 = vsel %vm848, %v1023, 0
        %v1072 = vsel %vm848, %v1024, 0
        %vm1074 = vcmask 1043456
        %v1076 = vsel %vm1074, %v1025, 0
        %1078 = vmatpush.msra.mxu0 0.0
        %1079 = vmatpush.msra.mxu0 0.0
        %1080 = vmatpush.msra.mxu0 0.0
        %1081 = vmatpush.msra.mxu0 0.0
        %1082 = vmatpush.msra.mxu0 0.0
        %1083 = vmatpush.msra.mxu0 0.0
        %1084 = vmatpush.msra.mxu0 0.0
        %1085 = vmatpush.msra.mxu0 0.0
        %1086 = vmatpush.msra.mxu0 0.0
        %1087 = vmatpush.msra.mxu0 0.0
        %1088 = vmatpush.msra.mxu0 0.0
        %1089 = vmatpush.msra.mxu0 0.0
        %1090 = vmatpush.msra.mxu0 0.0
        %1091 = vmatpush.msra.mxu0 0.0
        %1092 = vmatpush.msra.mxu0 0.0
        %1093 = vmatpush.msra.mxu0 %v1076
        %1094 = vmatmul.f32.gmra.mxu0 %v1027
        %v1095 = vpop.f32.mrf.mxu0
        %v1096 = vadd.f32 0.0, %v1095
        %1097 = vmatmul.f32.gmra.mxu0 %v1030
        %v1098 = vpop.f32.mrf.mxu0
        %v1099 = vadd.f32 0.0, %v1098
        %1100 = vmatmul.f32.gmra.mxu0 %v1033
        %v1101 = vpop.f32.mrf.mxu0
        %v1102 = vadd.f32 0.0, %v1101
        %1103 = vmatmul.f32.gmra.mxu0 %v1036
        %v1104 = vpop.f32.mrf.mxu0
        %v1105 = vadd.f32 0.0, %v1104
        %1106 = vmatmul.f32.gmra.mxu0 %v1039
        %v1107 = vpop.f32.mrf.mxu0
        %v1108 = vadd.f32 0.0, %v1107
        %1109 = vmatmul.f32.gmra.mxu0 %v1042
        %v1110 = vpop.f32.mrf.mxu0
        %v1111 = vadd.f32 0.0, %v1110
        %1112 = vmatmul.f32.gmra.mxu0 %v1045
        %v1113 = vpop.f32.mrf.mxu0
        %v1114 = vadd.f32 0.0, %v1113
        %1115 = vmatmul.f32.gmra.mxu0 %v1048
        %v1116 = vpop.f32.mrf.mxu0
        %v1117 = vadd.f32 0.0, %v1116
        %1118 = vmatmul.f32.gmra.mxu0 %v1051
        %v1119 = vpop.f32.mrf.mxu0
        %v1120 = vadd.f32 0.0, %v1119
        %1121 = vmatmul.f32.gmra.mxu0 %v1054
        %v1122 = vpop.f32.mrf.mxu0
        %v1123 = vadd.f32 0.0, %v1122
        %1124 = vmatmul.f32.gmra.mxu0 %v1057
        %v1125 = vpop.f32.mrf.mxu0
        %v1126 = vadd.f32 0.0, %v1125
        %1127 = vmatmul.f32.gmra.mxu0 %v1060
        %v1128 = vpop.f32.mrf.mxu0
        %v1129 = vadd.f32 0.0, %v1128
        %1130 = vmatmul.f32.gmra.mxu0 %v1063
        %v1131 = vpop.f32.mrf.mxu0
        %v1132 = vadd.f32 0.0, %v1131
        %1133 = vmatmul.f32.gmra.mxu0 %v1066
        %v1134 = vpop.f32.mrf.mxu0
        %v1135 = vadd.f32 0.0, %v1134
        %1136 = vmatmul.f32.gmra.mxu0 %v1069
        %v1137 = vpop.f32.mrf.mxu0
        %v1138 = vadd.f32 0.0, %v1137
        %1139 = vmatmul.f32.gmra.mxu0 %v1072
        %v1140 = vpop.f32.mrf.mxu0
        %v1141 = vadd.f32 0.0, %v1140
        %1142 = vdwg.mxu0
        %v1143 = vmul.f32 %v415, %v1096
        %v1144 = vmul.f32 %v416, %v1099
        %v1145 = vmul.f32 %v417, %v1102
        %v1146 = vmul.f32 %v418, %v1105
        %v1147 = vmul.f32 %v419, %v1108
        %v1148 = vmul.f32 %v420, %v1111
        %v1149 = vmul.f32 %v421, %v1114
        %v1150 = vmul.f32 %v422, %v1117
        %v1151 = vmul.f32 %v423, %v1120
        %v1152 = vmul.f32 %v424, %v1123
        %v1153 = vmul.f32 %v425, %v1126
        %v1154 = vmul.f32 %v426, %v1129
        %v1155 = vmul.f32 %v427, %v1132
        %v1156 = vmul.f32 %v428, %v1135
        %v1157 = vmul.f32 %v429, %v1138
        %v1158 = vmul.f32 %v430, %v1141
        %v1159 = vld [vmem:[%s8] sm:$0xff]
        %v1160 = vld [vmem:[%s8 + $0x8] sm:$0xff]
        %v1161 = vld [vmem:[%s8 + $0x10] sm:$0xff]
        %v1162 = vld [vmem:[%s8 + $0x18] sm:$0xff]
        %v1163 = vld [vmem:[%s9] sm:$0x1]
        %v1165 = vperm.slane %v1163, 0
        %v1168 = vsel %vm439, %v1143, 0
        %v1171 = vsel %vm439, %v1144, 0
        %v1174 = vsel %vm439, %v1145, 0
        %v1177 = vsel %vm439, %v1146, 0
        %v1180 = vsel %vm439, %v1147, 0
        %v1183 = vsel %vm439, %v1148, 0
        %v1186 = vsel %vm439, %v1149, 0
        %v1189 = vsel %vm439, %v1150, 0
        %v1192 = vsel %vm439, %v1151, 0
        %v1195 = vsel %vm439, %v1152, 0
        %v1198 = vsel %vm439, %v1153, 0
        %v1201 = vsel %vm439, %v1154, 0
        %v1204 = vsel %vm439, %v1155, 0
        %v1207 = vsel %vm439, %v1156, 0
        %v1210 = vsel %vm439, %v1157, 0
        %v1213 = vsel %vm439, %v1158, 0
        %1215 = vmatpush.msra.mxu0 0.0
        %1216 = vmatpush.msra.mxu0 0.0
        %1217 = vmatpush.msra.mxu0 0.0
        %1218 = vmatpush.msra.mxu0 0.0
        %1219 = vmatpush.msra.mxu0 0.0
        %1220 = vmatpush.msra.mxu0 0.0
        %1221 = vmatpush.msra.mxu0 0.0
        %1222 = vmatpush.msra.mxu0 0.0
        %1223 = vmatpush.msra.mxu0 0.0
        %1224 = vmatpush.msra.mxu0 0.0
        %1225 = vmatpush.msra.mxu0 0.0
        %1226 = vmatpush.msra.mxu0 0.0
        %1227 = vmatpush.msra.mxu0 %v1162
        %1228 = vmatpush.msra.mxu0 %v1161
        %1229 = vmatpush.msra.mxu0 %v1160
        %1230 = vmatpush.msra.mxu0 %v1159
        %1231 = vmatmul.f32.gmra.mxu0 %v1168
        %v1232 = vpop.f32.mrf.mxu0
        %v1233 = vadd.f32 %v1165, %v1232
        %1234 = vmatmul.f32.gmra.mxu0 %v1171
        %v1235 = vpop.f32.mrf.mxu0
        %v1236 = vadd.f32 %v1165, %v1235
        %1237 = vmatmul.f32.gmra.mxu0 %v1174
        %v1238 = vpop.f32.mrf.mxu0
        %v1239 = vadd.f32 %v1165, %v1238
        %1240 = vmatmul.f32.gmra.mxu0 %v1177
        %v1241 = vpop.f32.mrf.mxu0
        %v1242 = vadd.f32 %v1165, %v1241
        %1243 = vmatmul.f32.gmra.mxu0 %v1180
        %v1244 = vpop.f32.mrf.mxu0
        %v1245 = vadd.f32 %v1165, %v1244
        %1246 = vmatmul.f32.gmra.mxu0 %v1183
        %v1247 = vpop.f32.mrf.mxu0
        %v1248 = vadd.f32 %v1165, %v1247
        %1249 = vmatmul.f32.gmra.mxu0 %v1186
        %v1250 = vpop.f32.mrf.mxu0
        %v1251 = vadd.f32 %v1165, %v1250
        %1252 = vmatmul.f32.gmra.mxu0 %v1189
        %v1253 = vpop.f32.mrf.mxu0
        %v1254 = vadd.f32 %v1165, %v1253
        %1255 = vmatmul.f32.gmra.mxu0 %v1192
        %v1256 = vpop.f32.mrf.mxu0
        %v1257 = vadd.f32 %v1165, %v1256
        %1258 = vmatmul.f32.gmra.mxu0 %v1195
        %v1259 = vpop.f32.mrf.mxu0
        %v1260 = vadd.f32 %v1165, %v1259
        %1261 = vmatmul.f32.gmra.mxu0 %v1198
        %v1262 = vpop.f32.mrf.mxu0
        %v1263 = vadd.f32 %v1165, %v1262
        %1264 = vmatmul.f32.gmra.mxu0 %v1201
        %v1265 = vpop.f32.mrf.mxu0
        %v1266 = vadd.f32 %v1165, %v1265
        %1267 = vmatmul.f32.gmra.mxu0 %v1204
        %v1268 = vpop.f32.mrf.mxu0
        %v1269 = vadd.f32 %v1165, %v1268
        %1270 = vmatmul.f32.gmra.mxu0 %v1207
        %v1271 = vpop.f32.mrf.mxu0
        %v1272 = vadd.f32 %v1165, %v1271
        %1273 = vmatmul.f32.gmra.mxu0 %v1210
        %v1274 = vpop.f32.mrf.mxu0
        %v1275 = vadd.f32 %v1165, %v1274
        %1276 = vmatmul.f32.gmra.mxu0 %v1213
        %v1277 = vpop.f32.mrf.mxu0
        %v1278 = vadd.f32 %v1165, %v1277
        %1279 = vdwg.mxu0
        %v1280 = vmax.f32 %v1233, 0.0
        %v1281 = vmax.f32 %v1236, 0.0
        %v1282 = vmax.f32 %v1239, 0.0
        %v1283 = vmax.f32 %v1242, 0.0
        %v1284 = vmax.f32 %v1245, 0.0
        %v1285 = vmax.f32 %v1248, 0.0
        %v1286 = vmax.f32 %v1251, 0.0
        %v1287 = vmax.f32 %v1254, 0.0
        %v1288 = vmax.f32 %v1257, 0.0
        %v1289 = vmax.f32 %v1260, 0.0
        %v1290 = vmax.f32 %v1263, 0.0
        %v1291 = vmax.f32 %v1266, 0.0
        %v1292 = vmax.f32 %v1269, 0.0
        %v1293 = vmax.f32 %v1272, 0.0
        %v1294 = vmax.f32 %v1275, 0.0
        %v1295 = vmax.f32 %v1278, 0.0
        %v1296 = vld [vmem:[%s10] sm:$0xff]
        %v1297 = vld [vmem:[%s10 + $0x8] sm:$0xff]
        %v1298 = vld [vmem:[%s10 + $0x10] sm:$0xff]
        %v1299 = vld [vmem:[%s10 + $0x18] sm:$0xff]
        %v1300 = vld [vmem:[%s10 + $0x20] sm:$0xff]
        %v1301 = vld [vmem:[%s10 + $0x28] sm:$0xff]
        %v1302 = vld [vmem:[%s10 + $0x30] sm:$0xff]
        %v1303 = vld [vmem:[%s10 + $0x38] sm:$0xff]
        %v1304 = vld [vmem:[%s10 + $0x40] sm:$0xff]
        %v1305 = vld [vmem:[%s10 + $0x48] sm:$0xff]
        %v1306 = vld [vmem:[%s10 + $0x50] sm:$0xff]
        %v1307 = vld [vmem:[%s10 + $0x58] sm:$0xff]
        %v1308 = vld [vmem:[%s10 + $0x60] sm:$0xff]
        %v1309 = vld [vmem:[%s10 + $0x68] sm:$0xff]
        %v1310 = vld [vmem:[%s10 + $0x70] sm:$0xff]
        %v1311 = vld [vmem:[%s10 + $0x78] sm:$0xff]
        %v1312 = vld [vmem:[%s11] sm:$0x1]
        %v1314 = vperm.slane %v1312, 0
        %1316 = vmatpush.msra.mxu0 %v1311
        %1317 = vmatpush.msra.mxu0 %v1310
        %1318 = vmatpush.msra.mxu0 %v1309
        %1319 = vmatpush.msra.mxu0 %v1308
        %1320 = vmatpush.msra.mxu0 %v1307
        %1321 = vmatpush.msra.mxu0 %v1306
        %1322 = vmatpush.msra.mxu0 %v1305
        %1323 = vmatpush.msra.mxu0 %v1304
        %1324 = vmatpush.msra.mxu0 %v1303
        %1325 = vmatpush.msra.mxu0 %v1302
        %1326 = vmatpush.msra.mxu0 %v1301
        %1327 = vmatpush.msra.mxu0 %v1300
        %1328 = vmatpush.msra.mxu0 %v1299
        %1329 = vmatpush.msra.mxu0 %v1298
        %1330 = vmatpush.msra.mxu0 %v1297
        %1331 = vmatpush.msra.mxu0 %v1296
        %1332 = vmatmul.f32.gmra.mxu0 %v1280
        %v1333 = vpop.f32.mrf.mxu0
        %v1334 = vadd.f32 %v1314, %v1333
        %1335 = vmatmul.f32.gmra.mxu0 %v1281
        %v1336 = vpop.f32.mrf.mxu0
        %v1337 = vadd.f32 %v1314, %v1336
        %1338 = vmatmul.f32.gmra.mxu0 %v1282
        %v1339 = vpop.f32.mrf.mxu0
        %v1340 = vadd.f32 %v1314, %v1339
        %1341 = vmatmul.f32.gmra.mxu0 %v1283
        %v1342 = vpop.f32.mrf.mxu0
        %v1343 = vadd.f32 %v1314, %v1342
        %1344 = vmatmul.f32.gmra.mxu0 %v1284
        %v1345 = vpop.f32.mrf.mxu0
        %v1346 = vadd.f32 %v1314, %v1345
        %1347 = vmatmul.f32.gmra.mxu0 %v1285
        %v1348 = vpop.f32.mrf.mxu0
        %v1349 = vadd.f32 %v1314, %v1348
        %1350 = vmatmul.f32.gmra.mxu0 %v1286
        %v1351 = vpop.f32.mrf.mxu0
        %v1352 = vadd.f32 %v1314, %v1351
        %1353 = vmatmul.f32.gmra.mxu0 %v1287
        %v1354 = vpop.f32.mrf.mxu0
        %v1355 = vadd.f32 %v1314, %v1354
        %1356 = vmatmul.f32.gmra.mxu0 %v1288
        %v1357 = vpop.f32.mrf.mxu0
        %v1358 = vadd.f32 %v1314, %v1357
        %1359 = vmatmul.f32.gmra.mxu0 %v1289
        %v1360 = vpop.f32.mrf.mxu0
        %v1361 = vadd.f32 %v1314, %v1360
        %1362 = vmatmul.f32.gmra.mxu0 %v1290
        %v1363 = vpop.f32.mrf.mxu0
        %v1364 = vadd.f32 %v1314, %v1363
        %1365 = vmatmul.f32.gmra.mxu0 %v1291
        %v1366 = vpop.f32.mrf.mxu0
        %v1367 = vadd.f32 %v1314, %v1366
        %1368 = vmatmul.f32.gmra.mxu0 %v1292
        %v1369 = vpop.f32.mrf.mxu0
        %v1370 = vadd.f32 %v1314, %v1369
        %1371 = vmatmul.f32.gmra.mxu0 %v1293
        %v1372 = vpop.f32.mrf.mxu0
        %v1373 = vadd.f32 %v1314, %v1372
        %1374 = vmatmul.f32.gmra.mxu0 %v1294
        %v1375 = vpop.f32.mrf.mxu0
        %v1376 = vadd.f32 %v1314, %v1375
        %1377 = vmatmul.f32.gmra.mxu0 %v1295
        %v1378 = vpop.f32.mrf.mxu0
        %v1379 = vadd.f32 %v1314, %v1378
        %1380 = vdwg.mxu0
        %v1381 = vmax.f32 %v1334, 0.0
        %v1382 = vmax.f32 %v1337, 0.0
        %v1383 = vmax.f32 %v1340, 0.0
        %v1384 = vmax.f32 %v1343, 0.0
        %v1385 = vmax.f32 %v1346, 0.0
        %v1386 = vmax.f32 %v1349, 0.0
        %v1387 = vmax.f32 %v1352, 0.0
        %v1388 = vmax.f32 %v1355, 0.0
        %v1389 = vmax.f32 %v1358, 0.0
        %v1390 = vmax.f32 %v1361, 0.0
        %v1391 = vmax.f32 %v1364, 0.0
        %v1392 = vmax.f32 %v1367, 0.0
        %v1393 = vmax.f32 %v1370, 0.0
        %v1394 = vmax.f32 %v1373, 0.0
        %v1395 = vmax.f32 %v1376, 0.0
        %v1396 = vmax.f32 %v1379, 0.0
        %1397 = vst [vmem:[%s407] sm:$0xff] %v1381
        %1398 = vst [vmem:[%s407 + $0x8] sm:$0xff] %v1382
        %1399 = vst [vmem:[%s407 + $0x10] sm:$0xff] %v1383
        %1400 = vst [vmem:[%s407 + $0x18] sm:$0xff] %v1384
        %1401 = vst [vmem:[%s407 + $0x20] sm:$0xff] %v1385
        %1402 = vst [vmem:[%s407 + $0x28] sm:$0xff] %v1386
        %1403 = vst [vmem:[%s407 + $0x30] sm:$0xff] %v1387
        %1404 = vst [vmem:[%s407 + $0x38] sm:$0xff] %v1388
        %1405 = vst [vmem:[%s407 + $0x40] sm:$0xff] %v1389
        %1406 = vst [vmem:[%s407 + $0x48] sm:$0xff] %v1390
        %1407 = vst [vmem:[%s407 + $0x50] sm:$0xff] %v1391
        %1408 = vst [vmem:[%s407 + $0x58] sm:$0xff] %v1392
        %1409 = vst [vmem:[%s407 + $0x60] sm:$0xff] %v1393
        %1410 = vst [vmem:[%s407 + $0x68] sm:$0xff] %v1394
        %1411 = vst [vmem:[%s407 + $0x70] sm:$0xff] %v1395
        %1412 = vst [vmem:[%s407 + $0x78] sm:$0xff] %v1396
        %s1413 = sand.u32 %s291, 1
        %s1414 = scalar_lea.sflag [#allocation3], %s1413
        %s1415 = sand.u32 %s291, 1
        %s1416 = smul.addr %s1415, 128
        %s1417 = scalar_lea.vmem [#allocation2], %s1416
        // Predicated region
        $region69: #{tpu_custom_call.1} parent=67 // pred_check
          %p1418 = pneg %p301
        $region70: #{tpu_custom_call.1} parent=67 // pred_check_branch
          %1420 = sbr.rel (%p1418) target = $region72
        $region71: #{tpu_custom_call.1} parent=67 // pred_region
          %s1421 = smul.u32 16, %s26
          %1423 = vsyncadd %s1414, 0
          %s1424 = smul.addr %s1421, 8
          %s1425 = scalar_lea.hbm %s12, %s1424
          %s1426 = sshll.u32 %s1417, 4
          %s1427 = int_to_ptr.vmem [resolvable:$true] %s1426
          %s1428 = sshll.u32 %s1425, 4
          %s1429 = int_to_ptr.hbm [resolvable:$true] %s1428
          %1434 = dma.vmem_to_hbm [thread:$0]  %s1427, 2048, %s1429, %s1414, 128, 128, 8
        $region72: #{tpu_custom_call.1} parent=67 // pred_fallthru
          _
      $region68: #{tpu_custom_call.1} parent=5 // pred_fallthru
        _
      %p1435 = scmp.le.s32.totalorder 2, %s21
      // Predicated region
      $region73: #{tpu_custom_call.1} parent=5 // pred_check
        %p1436 = pneg %p1435
      $region74: #{tpu_custom_call.1} parent=5 // pred_check_branch
        %1438 = sbr.rel (%p1436) target = $region76
      $region75: #{tpu_custom_call.1} parent=5 // pred_region
        %s1439 = ssub.s32 %s21, 2
        // Predicated region
        $region77: #{tpu_custom_call.1} parent=75 // pred_check
          %p1440 = pneg %p307
        $region78: #{tpu_custom_call.1} parent=75 // pred_check_branch
          %1442 = sbr.rel (%p1440) target = $region80
        $region79: #{tpu_custom_call.1} parent=75 // pred_region
          %s1443 = sand.u32 %s292, 1
          %s1444 = scalar_lea.sflag [#allocation3], %s1443
          %s1445 = sand.u32 %s292, 1
          %s1446 = smul.addr %s1445, 128
          %s1447 = scalar_lea.vmem [#allocation2], %s1446
          %1449 = dma.done %s1444, 2048
        $region80: #{tpu_custom_call.1} parent=75 // pred_fallthru
          _
      $region76: #{tpu_custom_call.1} parent=5 // pred_fallthru
        _
    $region6: #{tpu_custom_call.1} parent=1 // loop_footer
      %s25 = sadd.s32 1, %s21
    $region7: #{tpu_custom_call.1} parent=1 // loop_footer_branch
      %20 = sbr.rel target = $region3
    $region8: #{tpu_custom_call.1} parent=1 // loop_exit
      _
    %1450 = vsyncpa [#allocation3], 1
    %s1451 = scalar_lea.sflag [#allocation3], 1
    %1452 = vsyncpa %s1451, 1

</llo_original>
